<compile_context>
chip_gen: v7x
topology: tpu7x:2x2x1
jax: 0.10.0
libtpu: 0.0.40
codegen_flags: <defaults>
</compile_context>

<pallas_src>
import jax
import jax.numpy as jnp
from jax import lax
from jax.experimental import pallas as pl
from jax.experimental.pallas import tpu as pltpu


_SMALL_C = 8              # at/below this channel count use VPU outer products
_MIN_BLOCK_L = 128
_MAX_BLOCK_L = 512
_X_STREAM_BUDGET = 8 << 20   # budget for the double-buffered x stream (v7x-safe)
_VMEM_CAP = 48 << 20         # stay well under v7x's 64 MiB physical VMEM


def dale_sender_kernel(x_ref, w_ip_ref, b_ip_ref, ids_ref, emb_gate_ref,
                       b_g_ref, w_hht_ref, w_ap_ref, b_ap_ref, w_ht_ref,
                       out_ref, attr_sc, dot_sc):
    """One (core, L-block) grid step.

    x_ref       : (B, C, Lb)  image-encoder feature block (channels-first)
    w_ip_ref    : (P, C)      image_projection weight
    b_ip_ref    : (P, 1)      image_projection bias (column layout)
    ids_ref     : (B, T)      int32 attribute tokens
    emb_gate_ref: (V, 4H)     embedding @ W_ih^T  (hoisted to the wrapper)
    b_g_ref     : (1, 4H)     LSTM b_ih + b_hh (combined)
    w_hht_ref   : (H, 4H)     LSTM W_hh^T
    w_ap_ref    : (P, H)      attribute_projection weight (PyTorch layout)
    b_ap_ref    : (P, 1)      attribute_projection bias (column layout)
    w_ht_ref    : (Lc, S)     hidden-layer weight^T slice owned by this core
    out_ref     : (B, S)      this core's partial output (bias added in wrapper)
    attr_sc     : (P, B)      projected attributes, transposed (computed once)
    dot_sc      : (B, Lc)     per-core dot(image, attributes) staging buffer
    """
    f32 = jnp.float32
    li = pl.program_id(1)                       # L-block index within this core
    batch, chans, block_l = x_ref.shape
    hid = w_hht_ref.shape[0]
    n_attr = ids_ref.shape[1]
    vocab = emb_gate_ref.shape[0]
    small_c = chans <= _SMALL_C

    # ---- attribute path (runs once per core): fused embedding + LSTM + proj.
    @pl.when(li == 0)
    def _init():
        ids = ids_ref[...]                                        # (B, T)
        emb_gate = emb_gate_ref[...]                              # (V, 4H)
        b_g = b_g_ref[...]                                        # (1, 4H)
        w_hht = w_hht_ref[...]                                    # (H, 4H)
        iota_v = lax.broadcasted_iota(jnp.int32, (batch, vocab), 1)
        h = jnp.zeros((batch, hid), f32)
        c = jnp.zeros((batch, hid), f32)
        for t in range(n_attr):                 # static, tiny trip count
            onehot_t = (ids[:, t:t + 1] == iota_v).astype(f32)    # (B, V)
            gates = (jnp.dot(onehot_t, emb_gate, preferred_element_type=f32)
                     + jnp.dot(h, w_hht, preferred_element_type=f32)
                     + b_g)                                       # (B, 4H)
            i_g = jax.nn.sigmoid(gates[:, 0 * hid:1 * hid])       # PyTorch order
            f_g = jax.nn.sigmoid(gates[:, 1 * hid:2 * hid])
            g_g = jnp.tanh(gates[:, 2 * hid:3 * hid])
            o_g = jax.nn.sigmoid(gates[:, 3 * hid:4 * hid])
            c = f_g * c + i_g * g_g
            h = o_g * jnp.tanh(c)
        # Stored as (P, B) so the image path slices columns without relayout.
        attr_sc[...] = jnp.tanh(
            jnp.dot(w_ap_ref[...], h.T, preferred_element_type=f32)
            + b_ap_ref[...])                                      # (P, B)

    # ---- image path for this L block (lane-dense (P, Lb) layout).
    b_ip = b_ip_ref[...]                                          # (P, 1)
    if small_c:
        x_blk = x_ref[...].astype(f32)                            # (B, C, Lb)
        w_ip = w_ip_ref[...].astype(f32)                          # (P, C)
    else:
        x_blk = x_ref[...]                                        # stream dtype
        w_ip = w_ip_ref[...]

    l_off = pl.multiple_of(li * block_l, block_l)
    for b in range(batch):                      # static batch loop
        xb = x_blk[b]                                             # (C, Lb)
        if small_c:
            # Tiny K: outer-product VPU FMAs instead of a K<=8 MXU call.
            acc = w_ip[:, 0:1] * xb[0:1, :]                       # (P, Lb)
            for ci in range(1, chans):
                acc = acc + w_ip[:, ci:ci + 1] * xb[ci:ci + 1, :]
            proj_b = jnp.tanh(acc + b_ip)                         # (P, Lb)
        else:
            proj_b = jnp.tanh(
                jnp.dot(w_ip, xb, preferred_element_type=f32) + b_ip)
        # VPU multiply + sublane (XLU) reduce replaces the M=1 MXU matmul.
        attr_col = attr_sc[:, b:b + 1]                            # (P, 1)
        row = jnp.sum(attr_col * proj_b, axis=0, keepdims=True)   # (1, Lb)
        dot_sc[pl.ds(b, 1), pl.ds(l_off, block_l)] = row

    # ---- hidden layer: single large-K MXU contraction per core.
    @pl.when(li == pl.num_programs(1) - 1)
    def _finish():
        out_ref[...] = jnp.dot(dot_sc[...], w_ht_ref[...],
                               preferred_element_type=f32)        # (B, S)


def _pad2(rows, cols, item=4):
    return (-(-rows // 8) * 8) * (-(-cols // 128) * 128) * item


def _pick_block_l(L, B, C, itemsize):
    bl = min(L, _MAX_BLOCK_L)
    while bl > _MIN_BLOCK_L and 2 * B * C * bl * itemsize > _X_STREAM_BUDGET:
        bl //= 2
    if bl >= L or L % bl != 0 or bl % _MIN_BLOCK_L != 0:
        bl = L                              # small / awkward L: one block
    return bl


def dale_attribute_sender(feat, attr_ids, params, *, x_dtype=jnp.bfloat16,
                          block_l=None):
    """feat: (B, C, H', W') image-encoder feature map; attr_ids: (B, T) tokens."""
    B, C, Hi, Wi = feat.shape
    L = Hi * Wi
    P = params["w_ip"].shape[0]
    G, Hl = params["w_hh"].shape                # G = 4 * lstm_hidden
    V = params["emb"].shape[0]
    S = params["w_h"].shape[0]
    T = attr_ids.shape[1]

    f32 = jnp.float32
    x_itemsize = jnp.dtype(x_dtype).itemsize
    if block_l is None:
        block_l = _pick_block_l(L, B, C, x_itemsize)
    if L % block_l != 0:
        block_l = L
    n_blk = L // block_l
    # Leading "parallel" axis -> both TensorCores on v7x; each core owns its
    # own output partial, so the inner L reduction stays race-free.
    n_cores = 2 if (n_blk >= 2 and n_blk % 2 == 0) else 1
    n_lblk = n_blk // n_cores
    l_per_core = L // n_cores

    small_c = C <= _SMALL_C
    # Free reshape only (merges trailing contiguous dims) -- no transpose of
    # the big activation.  bf16 halves the dominant HBM stream; all in-kernel
    # accumulation stays f32.
    x = feat.reshape(B, C, L).astype(x_dtype)
    w_ip = params["w_ip"].astype(f32 if small_c else x_dtype)
    emb_gate = jnp.dot(params["emb"].astype(f32),
                       jnp.transpose(params["w_ih"]).astype(f32))   # (V, 4H)

    args = (
        x,                                                         # (B, C, L)
        w_ip,                                                      # (P, C)
        params["b_ip"].reshape(P, 1).astype(f32),                  # (P, 1)
        attr_ids.astype(jnp.int32),                                # (B, T)
        emb_gate,                                                  # (V, 4H)
        (params["b_ih"] + params["b_hh"]).reshape(1, G).astype(f32),
        jnp.transpose(params["w_hh"]).astype(f32),                 # (H, 4H)
        params["w_ap"].astype(f32),                                # (P, H)
        params["b_ap"].reshape(P, 1).astype(f32),                  # (P, 1)
        jnp.transpose(params["w_h"]).astype(f32),                  # (L, S)
    )

    in_specs = [
        pl.BlockSpec((B, C, block_l), lambda c, l: (0, 0, c * n_lblk + l)),
        pl.BlockSpec((P, C), lambda c, l: (0, 0)),
        pl.BlockSpec((P, 1), lambda c, l: (0, 0)),
        pl.BlockSpec((B, T), lambda c, l: (0, 0)),
        pl.BlockSpec((V, G), lambda c, l: (0, 0)),
        pl.BlockSpec((1, G), lambda c, l: (0, 0)),
        pl.BlockSpec((Hl, G), lambda c, l: (0, 0)),
        pl.BlockSpec((P, Hl), lambda c, l: (0, 0)),
        pl.BlockSpec((P, 1), lambda c, l: (0, 0)),
        pl.BlockSpec((l_per_core, S), lambda c, l: (c, 0)),        # resident
    ]
    out_spec = pl.BlockSpec((None, B, S), lambda c, l: (c, 0, 0))  # per-core

    # VMEM budget estimate (padded, double-buffered) with headroom below the
    # v7x 64 MiB physical limit.
    w_ip_item = 4 if small_c else x_itemsize
    est = 2 * B * (-(-C // 8) * 8) * (-(-block_l // 128) * 128) * x_itemsize
    est += 2 * (_pad2(P, C, w_ip_item) + _pad2(P, 1) + _pad2(B, T)
                + _pad2(V, G) + _pad2(1, G) + _pad2(Hl, G) + _pad2(P, Hl)
                + _pad2(P, 1) + _pad2(l_per_core, S) + _pad2(B, S))
    est += _pad2(P, B) + _pad2(B, l_per_core)          # scratch
    vmem_limit = int(min(max(2 * est, 32 << 20), _VMEM_CAP))

    grid_spec = pltpu.PrefetchScalarGridSpec(
        num_scalar_prefetch=0,
        grid=(n_cores, n_lblk),
        in_specs=in_specs,
        out_specs=out_spec,
        scratch_shapes=[pltpu.VMEM((P, B), jnp.float32),
                        pltpu.VMEM((B, l_per_core), jnp.float32)],
    )

    partials = pl.pallas_call(
        dale_sender_kernel,
        out_shape=jax.ShapeDtypeStruct((n_cores, B, S), jnp.float32),
        grid_spec=grid_spec,
        compiler_params=pltpu.CompilerParams(
            dimension_semantics=("parallel", "arbitrary"),
            vmem_limit_bytes=vmem_limit),
    )(*args)

    # Sum per-core partials and add the hidden-layer bias once.
    return jnp.sum(partials, axis=0) + params["b_h"].reshape(1, S).astype(f32)


def _reference(feat, attr_ids, p):
    """Pure-JAX replica of DaleAttributeSender.forward (encoder = identity)."""
    B, C, Hi, Wi = feat.shape
    L = Hi * Wi
    Hn = p["w_hh"].shape[1]
    enc = jnp.transpose(feat.reshape(B, C, L), (0, 2, 1))             # (B, L, C)
    proj_img = jnp.tanh(enc @ p["w_ip"].T + p["b_ip"])                # (B, L, P)
    embedded = p["emb"][attr_ids]                                     # (B, T, E)
    h = jnp.zeros((B, Hn), jnp.float32)
    c = jnp.zeros((B, Hn), jnp.float32)
    for t in range(attr_ids.shape[1]):
        gates = (embedded[:, t] @ p["w_ih"].T + p["b_ih"]
                 + h @ p["w_hh"].T + p["b_hh"])
        i = jax.nn.sigmoid(gates[:, :Hn])
        f = jax.nn.sigmoid(gates[:, Hn:2 * Hn])
        g = jnp.tanh(gates[:, 2 * Hn:3 * Hn])
        o = jax.nn.sigmoid(gates[:, 3 * Hn:])
        c = f * c + i * g
        h = o * jnp.tanh(c)
    attr = jnp.tanh(h @ p["w_ap"].T + p["b_ap"])                      # (B, P)
    dot = jnp.einsum("blp,bp->bl", proj_img, attr)                    # (B, L)
    return dot @ p["w_h"].T + p["b_h"]                                # (B, S)


def _run_case(name, key, *, B, C, HI, WI, T, V, E, HL, P, S, x_dtype,
              block_l=None, quantize_ref_inputs=False, atol=1e-3, rtol=1e-3):
    ks = jax.random.split(key, 13)
    feat = jax.random.normal(ks[0], (B, C, HI, WI), dtype=jnp.float32)
    attr_ids = jax.random.randint(ks[1], (B, T), 0, V, dtype=jnp.int32)
    params = dict(
        w_ip=0.2 * jax.random.normal(ks[2], (P, C), dtype=jnp.float32),
        b_ip=0.1 * jax.random.normal(ks[3], (P,), dtype=jnp.float32),
        emb=jax.random.normal(ks[4], (V, E), dtype=jnp.float32),
        w_ih=0.2 * jax.random.normal(ks[5], (4 * HL, E), dtype=jnp.float32),
        b_ih=0.1 * jax.random.normal(ks[6], (4 * HL,), dtype=jnp.float32),
        w_hh=0.2 * jax.random.normal(ks[7], (4 * HL, HL), dtype=jnp.float32),
        b_hh=0.1 * jax.random.normal(ks[8], (4 * HL,), dtype=jnp.float32),
        w_ap=0.2 * jax.random.normal(ks[9], (P, HL), dtype=jnp.float32),
        b_ap=0.1 * jax.random.normal(ks[10], (P,), dtype=jnp.float32),
        w_h=0.05 * jax.random.normal(ks[11], (S, HI * WI), dtype=jnp.float32),
        b_h=0.05 * jax.random.normal(ks[12], (S,), dtype=jnp.float32),
    )

    out = dale_attribute_sender(feat, attr_ids, params, x_dtype=x_dtype,
                                block_l=block_l)
    out = jax.block_until_ready(out)

    if quantize_ref_inputs:
        # Compare against a reference fed the same quantised image stream so
        # only accumulation-order differences remain.
        qfeat = feat.astype(x_dtype).astype(jnp.float32)
        qparams = dict(params)
        if C > _SMALL_C:
            qparams["w_ip"] = params["w_ip"].astype(x_dtype).astype(jnp.float32)
        ref = _reference(qfeat, attr_ids, qparams)
    else:
        ref = _reference(feat, attr_ids, params)

    assert out.shape == (B, S), (name, out.shape)
    assert jnp.allclose(out, ref, atol=atol, rtol=rtol), (name, out, ref)


if __name__ == "__main__":
    key = jax.random.PRNGKey(0)
    k1, k2, k3 = jax.random.split(key, 3)

    base = dict(B=2, C=4, HI=16, WI=16, T=3, V=20, E=32, HL=32, P=32, S=32)

    # 1) f32 end-to-end vs. exact float32 reference (single grid step, L=256).
    _run_case("f32_single_block", k1, **base, x_dtype=jnp.float32,
              atol=1e-3, rtol=1e-3)
    # 2) default bf16 x-stream vs. reference fed the bf16-quantised image.
    _run_case("bf16_single_block", k1, **base, x_dtype=jnp.bfloat16,
              quantize_ref_inputs=True, atol=2e-3, rtol=2e-3)
    # 3) multi L-block + two-partial ("both TensorCores") path, L=1024.
    _run_case("f32_multi_block", k2, B=2, C=4, HI=32, WI=32, T=3, V=20, E=32,
              HL=32, P=32, S=32, x_dtype=jnp.float32, block_l=128,
              atol=1e-3, rtol=1e-3)
    # 4) wide-channel image encoder (MXU image-projection path).
    _run_case("f32_wide_channels", k3, B=2, C=256, HI=8, WI=8, T=3, V=20,
              E=32, HL=32, P=32, S=32, x_dtype=jnp.float32,
              atol=1e-3, rtol=1e-3)

    print("KERNEL_OK")
</pallas_src>

<mosaic_0001>
module attributes {stable_mosaic.version = 11 : i64} {
  func.func @dale_sender_kernel(%arg0: i32, %arg1: i32, %arg2: memref<2x4x256xf32, #tpu.memory_space<vmem>>, %arg3: memref<32x4xf32, #tpu.memory_space<vmem>>, %arg4: memref<32x1xf32, #tpu.memory_space<vmem>>, %arg5: memref<2x3xi32, #tpu.memory_space<vmem>>, %arg6: memref<20x128xf32, #tpu.memory_space<vmem>>, %arg7: memref<1x128xf32, #tpu.memory_space<vmem>>, %arg8: memref<32x128xf32, #tpu.memory_space<vmem>>, %arg9: memref<32x32xf32, #tpu.memory_space<vmem>>, %arg10: memref<32x1xf32, #tpu.memory_space<vmem>>, %arg11: memref<256x32xf32, #tpu.memory_space<vmem>>, %arg12: memref<1x2x32xf32, #tpu.memory_space<vmem>>, %arg13: memref<32x2xf32, #tpu.memory_space<vmem>>, %arg14: memref<2x256xf32, #tpu.memory_space<vmem>>) attributes {dimension_semantics = [#tpu.dimension_semantics<parallel>, #tpu.dimension_semantics<arbitrary>], iteration_bounds = array<i64: 1, 1>, scalar_prefetch = 0 : i64, scratch_operands = 2 : i64, tpu.core_type = #tpu.core_type<tc>, window_params = [{transform_indices = @transform_0, window_bounds = array<i64: 2, 4, 256>}, {pipeline_mode = #tpu.pipeline_mode<synchronous>, transform_indices = @transform_1, window_bounds = array<i64: 32, 4>}, {pipeline_mode = #tpu.pipeline_mode<synchronous>, transform_indices = @transform_2, window_bounds = array<i64: 32, 1>}, {pipeline_mode = #tpu.pipeline_mode<synchronous>, transform_indices = @transform_3, window_bounds = array<i64: 2, 3>}, {pipeline_mode = #tpu.pipeline_mode<synchronous>, transform_indices = @transform_4, window_bounds = array<i64: 20, 128>}, {pipeline_mode = #tpu.pipeline_mode<synchronous>, transform_indices = @transform_5, window_bounds = array<i64: 1, 128>}, {pipeline_mode = #tpu.pipeline_mode<synchronous>, transform_indices = @transform_6, window_bounds = array<i64: 32, 128>}, {pipeline_mode = #tpu.pipeline_mode<synchronous>, transform_indices = @transform_7, window_bounds = array<i64: 32, 32>}, {pipeline_mode = #tpu.pipeline_mode<synchronous>, transform_indices = @transform_8, window_bounds = array<i64: 32, 1>}, {transform_indices = @transform_9, window_bounds = array<i64: 256, 32>}, {transform_indices = @transform_10, window_bounds = array<i64: 1, 2, 32>}]} {
    %c0_i32 = arith.constant 0 : i32
    %0 = arith.cmpi eq, %arg1, %c0_i32 : i32
    %1 = arith.extui %0 : i1 to i32
    %c0_i32_0 = arith.constant 0 : i32
    %2 = arith.cmpi ne, %1, %c0_i32_0 : i32
    scf.if %2 {
      %c0_15 = arith.constant 0 : index
      %c0_16 = arith.constant 0 : index
      %81 = vector.load %arg5[%c0_15, %c0_16] : memref<2x3xi32, #tpu.memory_space<vmem>>, vector<2x3xi32>
      %c0_17 = arith.constant 0 : index
      %c0_18 = arith.constant 0 : index
      %82 = vector.load %arg6[%c0_17, %c0_18] : memref<20x128xf32, #tpu.memory_space<vmem>>, vector<20x128xf32>
      %c0_19 = arith.constant 0 : index
      %c0_20 = arith.constant 0 : index
      %83 = vector.load %arg7[%c0_19, %c0_20] : memref<1x128xf32, #tpu.memory_space<vmem>>, vector<1x128xf32>
      %c0_21 = arith.constant 0 : index
      %c0_22 = arith.constant 0 : index
      %84 = vector.load %arg8[%c0_21, %c0_22] : memref<32x128xf32, #tpu.memory_space<vmem>>, vector<32x128xf32>
      %85 = tpu.iota {dimensions = array<i32: 1>} : vector<2x20xi32>
      %cst_23 = arith.constant 0.000000e+00 : f32
      %86 = vector.broadcast %cst_23 : f32 to vector<2x32xf32>
      %cst_24 = arith.constant 0.000000e+00 : f32
      %87 = vector.broadcast %cst_24 : f32 to vector<2x32xf32>
      %88 = vector.extract_strided_slice %81 {offsets = [0, 0], sizes = [2, 1], strides = [1, 1]} : vector<2x3xi32> to vector<2x1xi32>
      %89 = vector.broadcast %88 : vector<2x1xi32> to vector<2x20xi32>
      %90 = arith.cmpi eq, %89, %85 : vector<2x20xi32>
      %91 = arith.extui %90 : vector<2x20xi1> to vector<2x20xi32>
      %92 = arith.sitofp %91 : vector<2x20xi32> to vector<2x20xf32>
      %cst_25 = arith.constant dense<0.000000e+00> : vector<2x128xf32>
      %93 = tpu.matmul %92, %82, %cst_25 {dimension_numbers = #tpu.dot_dimension_numbers<[1], [0], [0], [1], [0, 0, 1, 1], [], []>} : vector<2x20xf32>, vector<20x128xf32>, vector<2x128xf32> -> vector<2x128xf32>
      %cst_26 = arith.constant dense<0.000000e+00> : vector<2x128xf32>
      %94 = tpu.matmul %86, %84, %cst_26 {dimension_numbers = #tpu.dot_dimension_numbers<[1], [0], [0], [1], [0, 0, 1, 1], [], []>} : vector<2x32xf32>, vector<32x128xf32>, vector<2x128xf32> -> vector<2x128xf32>
      %95 = arith.addf %93, %94 : vector<2x128xf32>
      %96 = vector.broadcast %83 : vector<1x128xf32> to vector<2x128xf32>
      %97 = arith.addf %95, %96 : vector<2x128xf32>
      %98 = vector.extract_strided_slice %97 {offsets = [0, 0], sizes = [2, 32], strides = [1, 1]} : vector<2x128xf32> to vector<2x32xf32>
      %99 = arith.negf %98 : vector<2x32xf32>
      %100 = math.exp %99 : vector<2x32xf32>
      %cst_27 = arith.constant 1.000000e+00 : f32
      %101 = vector.broadcast %cst_27 : f32 to vector<2x32xf32>
      %102 = arith.addf %101, %100 : vector<2x32xf32>
      %103 = arith.divf %101, %102 : vector<2x32xf32>
      %104 = vector.extract_strided_slice %97 {offsets = [0, 32], sizes = [2, 32], strides = [1, 1]} : vector<2x128xf32> to vector<2x32xf32>
      %105 = arith.negf %104 : vector<2x32xf32>
      %106 = math.exp %105 : vector<2x32xf32>
      %cst_28 = arith.constant 1.000000e+00 : f32
      %107 = vector.broadcast %cst_28 : f32 to vector<2x32xf32>
      %108 = arith.addf %107, %106 : vector<2x32xf32>
      %109 = arith.divf %107, %108 : vector<2x32xf32>
      %110 = vector.extract_strided_slice %97 {offsets = [0, 64], sizes = [2, 32], strides = [1, 1]} : vector<2x128xf32> to vector<2x32xf32>
      %111 = math.tanh %110 : vector<2x32xf32>
      %112 = vector.extract_strided_slice %97 {offsets = [0, 96], sizes = [2, 32], strides = [1, 1]} : vector<2x128xf32> to vector<2x32xf32>
      %113 = arith.negf %112 : vector<2x32xf32>
      %114 = math.exp %113 : vector<2x32xf32>
      %cst_29 = arith.constant 1.000000e+00 : f32
      %115 = vector.broadcast %cst_29 : f32 to vector<2x32xf32>
      %116 = arith.addf %115, %114 : vector<2x32xf32>
      %117 = arith.divf %115, %116 : vector<2x32xf32>
      %118 = arith.mulf %109, %87 : vector<2x32xf32>
      %119 = arith.mulf %103, %111 : vector<2x32xf32>
      %120 = arith.addf %118, %119 : vector<2x32xf32>
      %121 = math.tanh %120 : vector<2x32xf32>
      %122 = arith.mulf %117, %121 : vector<2x32xf32>
      %123 = vector.extract_strided_slice %81 {offsets = [0, 1], sizes = [2, 1], strides = [1, 1]} : vector<2x3xi32> to vector<2x1xi32>
      %124 = vector.broadcast %123 : vector<2x1xi32> to vector<2x20xi32>
      %125 = arith.cmpi eq, %124, %85 : vector<2x20xi32>
      %126 = arith.extui %125 : vector<2x20xi1> to vector<2x20xi32>
      %127 = arith.sitofp %126 : vector<2x20xi32> to vector<2x20xf32>
      %cst_30 = arith.constant dense<0.000000e+00> : vector<2x128xf32>
      %128 = tpu.matmul %127, %82, %cst_30 {dimension_numbers = #tpu.dot_dimension_numbers<[1], [0], [0], [1], [0, 0, 1, 1], [], []>} : vector<2x20xf32>, vector<20x128xf32>, vector<2x128xf32> -> vector<2x128xf32>
      %cst_31 = arith.constant dense<0.000000e+00> : vector<2x128xf32>
      %129 = tpu.matmul %122, %84, %cst_31 {dimension_numbers = #tpu.dot_dimension_numbers<[1], [0], [0], [1], [0, 0, 1, 1], [], []>} : vector<2x32xf32>, vector<32x128xf32>, vector<2x128xf32> -> vector<2x128xf32>
      %130 = arith.addf %128, %129 : vector<2x128xf32>
      %131 = vector.broadcast %83 : vector<1x128xf32> to vector<2x128xf32>
      %132 = arith.addf %130, %131 : vector<2x128xf32>
      %133 = vector.extract_strided_slice %132 {offsets = [0, 0], sizes = [2, 32], strides = [1, 1]} : vector<2x128xf32> to vector<2x32xf32>
      %134 = arith.negf %133 : vector<2x32xf32>
      %135 = math.exp %134 : vector<2x32xf32>
      %cst_32 = arith.constant 1.000000e+00 : f32
      %136 = vector.broadcast %cst_32 : f32 to vector<2x32xf32>
      %137 = arith.addf %136, %135 : vector<2x32xf32>
      %138 = arith.divf %136, %137 : vector<2x32xf32>
      %139 = vector.extract_strided_slice %132 {offsets = [0, 32], sizes = [2, 32], strides = [1, 1]} : vector<2x128xf32> to vector<2x32xf32>
      %140 = arith.negf %139 : vector<2x32xf32>
      %141 = math.exp %140 : vector<2x32xf32>
      %cst_33 = arith.constant 1.000000e+00 : f32
      %142 = vector.broadcast %cst_33 : f32 to vector<2x32xf32>
      %143 = arith.addf %142, %141 : vector<2x32xf32>
      %144 = arith.divf %142, %143 : vector<2x32xf32>
      %145 = vector.extract_strided_slice %132 {offsets = [0, 64], sizes = [2, 32], strides = [1, 1]} : vector<2x128xf32> to vector<2x32xf32>
      %146 = math.tanh %145 : vector<2x32xf32>
      %147 = vector.extract_strided_slice %132 {offsets = [0, 96], sizes = [2, 32], strides = [1, 1]} : vector<2x128xf32> to vector<2x32xf32>
      %148 = arith.negf %147 : vector<2x32xf32>
      %149 = math.exp %148 : vector<2x32xf32>
      %cst_34 = arith.constant 1.000000e+00 : f32
      %150 = vector.broadcast %cst_34 : f32 to vector<2x32xf32>
      %151 = arith.addf %150, %149 : vector<2x32xf32>
      %152 = arith.divf %150, %151 : vector<2x32xf32>
      %153 = arith.mulf %144, %120 : vector<2x32xf32>
      %154 = arith.mulf %138, %146 : vector<2x32xf32>
      %155 = arith.addf %153, %154 : vector<2x32xf32>
      %156 = math.tanh %155 : vector<2x32xf32>
      %157 = arith.mulf %152, %156 : vector<2x32xf32>
      %158 = vector.extract_strided_slice %81 {offsets = [0, 2], sizes = [2, 1], strides = [1, 1]} : vector<2x3xi32> to vector<2x1xi32>
      %159 = vector.broadcast %158 : vector<2x1xi32> to vector<2x20xi32>
      %160 = arith.cmpi eq, %159, %85 : vector<2x20xi32>
      %161 = arith.extui %160 : vector<2x20xi1> to vector<2x20xi32>
      %162 = arith.sitofp %161 : vector<2x20xi32> to vector<2x20xf32>
      %cst_35 = arith.constant dense<0.000000e+00> : vector<2x128xf32>
      %163 = tpu.matmul %162, %82, %cst_35 {dimension_numbers = #tpu.dot_dimension_numbers<[1], [0], [0], [1], [0, 0, 1, 1], [], []>} : vector<2x20xf32>, vector<20x128xf32>, vector<2x128xf32> -> vector<2x128xf32>
      %cst_36 = arith.constant dense<0.000000e+00> : vector<2x128xf32>
      %164 = tpu.matmul %157, %84, %cst_36 {dimension_numbers = #tpu.dot_dimension_numbers<[1], [0], [0], [1], [0, 0, 1, 1], [], []>} : vector<2x32xf32>, vector<32x128xf32>, vector<2x128xf32> -> vector<2x128xf32>
      %165 = arith.addf %163, %164 : vector<2x128xf32>
      %166 = vector.broadcast %83 : vector<1x128xf32> to vector<2x128xf32>
      %167 = arith.addf %165, %166 : vector<2x128xf32>
      %168 = vector.extract_strided_slice %167 {offsets = [0, 0], sizes = [2, 32], strides = [1, 1]} : vector<2x128xf32> to vector<2x32xf32>
      %169 = arith.negf %168 : vector<2x32xf32>
      %170 = math.exp %169 : vector<2x32xf32>
      %cst_37 = arith.constant 1.000000e+00 : f32
      %171 = vector.broadcast %cst_37 : f32 to vector<2x32xf32>
      %172 = arith.addf %171, %170 : vector<2x32xf32>
      %173 = arith.divf %171, %172 : vector<2x32xf32>
      %174 = vector.extract_strided_slice %167 {offsets = [0, 32], sizes = [2, 32], strides = [1, 1]} : vector<2x128xf32> to vector<2x32xf32>
      %175 = arith.negf %174 : vector<2x32xf32>
      %176 = math.exp %175 : vector<2x32xf32>
      %cst_38 = arith.constant 1.000000e+00 : f32
      %177 = vector.broadcast %cst_38 : f32 to vector<2x32xf32>
      %178 = arith.addf %177, %176 : vector<2x32xf32>
      %179 = arith.divf %177, %178 : vector<2x32xf32>
      %180 = vector.extract_strided_slice %167 {offsets = [0, 64], sizes = [2, 32], strides = [1, 1]} : vector<2x128xf32> to vector<2x32xf32>
      %181 = math.tanh %180 : vector<2x32xf32>
      %182 = vector.extract_strided_slice %167 {offsets = [0, 96], sizes = [2, 32], strides = [1, 1]} : vector<2x128xf32> to vector<2x32xf32>
      %183 = arith.negf %182 : vector<2x32xf32>
      %184 = math.exp %183 : vector<2x32xf32>
      %cst_39 = arith.constant 1.000000e+00 : f32
      %185 = vector.broadcast %cst_39 : f32 to vector<2x32xf32>
      %186 = arith.addf %185, %184 : vector<2x32xf32>
      %187 = arith.divf %185, %186 : vector<2x32xf32>
      %188 = arith.mulf %179, %155 : vector<2x32xf32>
      %189 = arith.mulf %173, %181 : vector<2x32xf32>
      %190 = arith.addf %188, %189 : vector<2x32xf32>
      %191 = math.tanh %190 : vector<2x32xf32>
      %192 = arith.mulf %187, %191 : vector<2x32xf32>
      %c0_40 = arith.constant 0 : index
      %c0_41 = arith.constant 0 : index
      %193 = vector.load %arg9[%c0_40, %c0_41] : memref<32x32xf32, #tpu.memory_space<vmem>>, vector<32x32xf32>
      %194 = tpu.transpose %192, [1, 0] : vector<2x32xf32> -> vector<32x2xf32>
      %cst_42 = arith.constant dense<0.000000e+00> : vector<32x2xf32>
      %195 = tpu.matmul %193, %194, %cst_42 {dimension_numbers = #tpu.dot_dimension_numbers<[1], [0], [0], [1], [0, 0, 1, 1], [], []>} : vector<32x32xf32>, vector<32x2xf32>, vector<32x2xf32> -> vector<32x2xf32>
      %c0_43 = arith.constant 0 : index
      %c0_44 = arith.constant 0 : index
      %196 = vector.load %arg10[%c0_43, %c0_44] : memref<32x1xf32, #tpu.memory_space<vmem>>, vector<32x1xf32>
      %197 = vector.broadcast %196 : vector<32x1xf32> to vector<32x2xf32>
      %198 = arith.addf %195, %197 : vector<32x2xf32>
      %199 = math.tanh %198 : vector<32x2xf32>
      %c0_45 = arith.constant 0 : index
      %c0_46 = arith.constant 0 : index
      %200 = vector.load %arg13[%c0_45, %c0_46] : memref<32x2xf32, #tpu.memory_space<vmem>>, vector<32x2xf32>
      tpu.vector_store %arg13[%c0_45, %c0_46], %199 {strides = array<i32>} : memref<32x2xf32, #tpu.memory_space<vmem>>, vector<32x2xf32>,
    } else {
    }
    %c0 = arith.constant 0 : index
    %c0_1 = arith.constant 0 : index
    %3 = vector.load %arg4[%c0, %c0_1] : memref<32x1xf32, #tpu.memory_space<vmem>>, vector<32x1xf32>
    %c0_2 = arith.constant 0 : index
    %c0_3 = arith.constant 0 : index
    %c0_4 = arith.constant 0 : index
    %4 = vector.load %arg2[%c0_2, %c0_3, %c0_4] : memref<2x4x256xf32, #tpu.memory_space<vmem>>, vector<2x4x256xf32>
    %c0_5 = arith.constant 0 : index
    %c0_6 = arith.constant 0 : index
    %5 = vector.load %arg3[%c0_5, %c0_6] : memref<32x4xf32, #tpu.memory_space<vmem>>, vector<32x4xf32>
    %c256_i32 = arith.constant 256 : i32
    %6 = arith.muli %arg1, %c256_i32 : i32
    %7 = tpu.assume_multiple %6, 256 : i32
    %8 = vector.extract_strided_slice %4 {offsets = [0, 0, 0], sizes = [1, 4, 256], strides = [1, 1, 1]} : vector<2x4x256xf32> to vector<1x4x256xf32>
    %9 = vector.shape_cast %8 : vector<1x4x256xf32> to vector<4x256xf32>
    %10 = vector.extract_strided_slice %5 {offsets = [0, 0], sizes = [32, 1], strides = [1, 1]} : vector<32x4xf32> to vector<32x1xf32>
    %11 = vector.extract_strided_slice %9 {offsets = [0, 0], sizes = [1, 256], strides = [1, 1]} : vector<4x256xf32> to vector<1x256xf32>
    %12 = vector.broadcast %10 : vector<32x1xf32> to vector<32x256xf32>
    %13 = vector.broadcast %11 : vector<1x256xf32> to vector<32x256xf32>
    %14 = arith.mulf %12, %13 : vector<32x256xf32>
    %15 = vector.extract_strided_slice %5 {offsets = [0, 1], sizes = [32, 1], strides = [1, 1]} : vector<32x4xf32> to vector<32x1xf32>
    %16 = vector.extract_strided_slice %9 {offsets = [1, 0], sizes = [1, 256], strides = [1, 1]} : vector<4x256xf32> to vector<1x256xf32>
    %17 = vector.broadcast %15 : vector<32x1xf32> to vector<32x256xf32>
    %18 = vector.broadcast %16 : vector<1x256xf32> to vector<32x256xf32>
    %19 = arith.mulf %17, %18 : vector<32x256xf32>
    %20 = arith.addf %14, %19 : vector<32x256xf32>
    %21 = vector.extract_strided_slice %5 {offsets = [0, 2], sizes = [32, 1], strides = [1, 1]} : vector<32x4xf32> to vector<32x1xf32>
    %22 = vector.extract_strided_slice %9 {offsets = [2, 0], sizes = [1, 256], strides = [1, 1]} : vector<4x256xf32> to vector<1x256xf32>
    %23 = vector.broadcast %21 : vector<32x1xf32> to vector<32x256xf32>
    %24 = vector.broadcast %22 : vector<1x256xf32> to vector<32x256xf32>
    %25 = arith.mulf %23, %24 : vector<32x256xf32>
    %26 = arith.addf %20, %25 : vector<32x256xf32>
    %27 = vector.extract_strided_slice %5 {offsets = [0, 3], sizes = [32, 1], strides = [1, 1]} : vector<32x4xf32> to vector<32x1xf32>
    %28 = vector.extract_strided_slice %9 {offsets = [3, 0], sizes = [1, 256], strides = [1, 1]} : vector<4x256xf32> to vector<1x256xf32>
    %29 = vector.broadcast %27 : vector<32x1xf32> to vector<32x256xf32>
    %30 = vector.broadcast %28 : vector<1x256xf32> to vector<32x256xf32>
    %31 = arith.mulf %29, %30 : vector<32x256xf32>
    %32 = arith.addf %26, %31 : vector<32x256xf32>
    %33 = vector.broadcast %3 : vector<32x1xf32> to vector<32x256xf32>
    %34 = arith.addf %32, %33 : vector<32x256xf32>
    %35 = math.tanh %34 : vector<32x256xf32>
    %c0_7 = arith.constant 0 : index
    %c0_8 = arith.constant 0 : index
    %36 = vector.load %arg13[%c0_7, %c0_8] : memref<32x2xf32, #tpu.memory_space<vmem>>, vector<32x1xf32>
    %37 = vector.broadcast %36 : vector<32x1xf32> to vector<32x256xf32>
    %38 = arith.mulf %37, %35 : vector<32x256xf32>
    %cst = arith.constant dense<0.000000e+00> : vector<256xf32>
    %39 = vector.multi_reduction <add>, %38, %cst [0] : vector<32x256xf32> to vector<256xf32>
    %40 = vector.shape_cast %39 : vector<256xf32> to vector<1x256xf32>
    %c0_9 = arith.constant 0 : index
    %41 = arith.index_cast %7 : i32 to index
    %42 = vector.load %arg14[%c0_9, %41] : memref<2x256xf32, #tpu.memory_space<vmem>>, vector<1x256xf32>
    tpu.vector_store %arg14[%c0_9, %41], %40 {strides = array<i32>} : memref<2x256xf32, #tpu.memory_space<vmem>>, vector<1x256xf32>,
    %43 = vector.extract_strided_slice %4 {offsets = [1, 0, 0], sizes = [1, 4, 256], strides = [1, 1, 1]} : vector<2x4x256xf32> to vector<1x4x256xf32>
    %44 = vector.shape_cast %43 : vector<1x4x256xf32> to vector<4x256xf32>
    %45 = vector.extract_strided_slice %5 {offsets = [0, 0], sizes = [32, 1], strides = [1, 1]} : vector<32x4xf32> to vector<32x1xf32>
    %46 = vector.extract_strided_slice %44 {offsets = [0, 0], sizes = [1, 256], strides = [1, 1]} : vector<4x256xf32> to vector<1x256xf32>
    %47 = vector.broadcast %45 : vector<32x1xf32> to vector<32x256xf32>
    %48 = vector.broadcast %46 : vector<1x256xf32> to vector<32x256xf32>
    %49 = arith.mulf %47, %48 : vector<32x256xf32>
    %50 = vector.extract_strided_slice %5 {offsets = [0, 1], sizes = [32, 1], strides = [1, 1]} : vector<32x4xf32> to vector<32x1xf32>
    %51 = vector.extract_strided_slice %44 {offsets = [1, 0], sizes = [1, 256], strides = [1, 1]} : vector<4x256xf32> to vector<1x256xf32>
    %52 = vector.broadcast %50 : vector<32x1xf32> to vector<32x256xf32>
    %53 = vector.broadcast %51 : vector<1x256xf32> to vector<32x256xf32>
    %54 = arith.mulf %52, %53 : vector<32x256xf32>
    %55 = arith.addf %49, %54 : vector<32x256xf32>
    %56 = vector.extract_strided_slice %5 {offsets = [0, 2], sizes = [32, 1], strides = [1, 1]} : vector<32x4xf32> to vector<32x1xf32>
    %57 = vector.extract_strided_slice %44 {offsets = [2, 0], sizes = [1, 256], strides = [1, 1]} : vector<4x256xf32> to vector<1x256xf32>
    %58 = vector.broadcast %56 : vector<32x1xf32> to vector<32x256xf32>
    %59 = vector.broadcast %57 : vector<1x256xf32> to vector<32x256xf32>
    %60 = arith.mulf %58, %59 : vector<32x256xf32>
    %61 = arith.addf %55, %60 : vector<32x256xf32>
    %62 = vector.extract_strided_slice %5 {offsets = [0, 3], sizes = [32, 1], strides = [1, 1]} : vector<32x4xf32> to vector<32x1xf32>
    %63 = vector.extract_strided_slice %44 {offsets = [3, 0], sizes = [1, 256], strides = [1, 1]} : vector<4x256xf32> to vector<1x256xf32>
    %64 = vector.broadcast %62 : vector<32x1xf32> to vector<32x256xf32>
    %65 = vector.broadcast %63 : vector<1x256xf32> to vector<32x256xf32>
    %66 = arith.mulf %64, %65 : vector<32x256xf32>
    %67 = arith.addf %61, %66 : vector<32x256xf32>
    %68 = vector.broadcast %3 : vector<32x1xf32> to vector<32x256xf32>
    %69 = arith.addf %67, %68 : vector<32x256xf32>
    %70 = math.tanh %69 : vector<32x256xf32>
    %c0_10 = arith.constant 0 : index
    %c1 = arith.constant 1 : index
    %71 = vector.load %arg13[%c0_10, %c1] : memref<32x2xf32, #tpu.memory_space<vmem>>, vector<32x1xf32>
    %72 = vector.broadcast %71 : vector<32x1xf32> to vector<32x256xf32>
    %73 = arith.mulf %72, %70 : vector<32x256xf32>
    %cst_11 = arith.constant dense<0.000000e+00> : vector<256xf32>
    %74 = vector.multi_reduction <add>, %73, %cst_11 [0] : vector<32x256xf32> to vector<256xf32>
    %75 = vector.shape_cast %74 : vector<256xf32> to vector<1x256xf32>
    %c1_12 = arith.constant 1 : index
    %76 = arith.index_cast %7 : i32 to index
    %77 = vector.load %arg14[%c1_12, %76] : memref<2x256xf32, #tpu.memory_space<vmem>>, vector<1x256xf32>
    tpu.vector_store %arg14[%c1_12, %76], %75 {strides = array<i32>} : memref<2x256xf32, #tpu.memory_space<vmem>>, vector<1x256xf32>,
    %c0_i32_13 = arith.constant 0 : i32
    %78 = arith.cmpi eq, %arg1, %c0_i32_13 : i32
    %79 = arith.extui %78 : i1 to i32
    %c0_i32_14 = arith.constant 0 : i32
    %80 = arith.cmpi ne, %79, %c0_i32_14 : i32
    scf.if %80 {
      %c0_15 = arith.constant 0 : index
      %c0_16 = arith.constant 0 : index
      %81 = vector.load %arg14[%c0_15, %c0_16] : memref<2x256xf32, #tpu.memory_space<vmem>>, vector<2x256xf32>
      %c0_17 = arith.constant 0 : index
      %c0_18 = arith.constant 0 : index
      %82 = vector.load %arg11[%c0_17, %c0_18] : memref<256x32xf32, #tpu.memory_space<vmem>>, vector<256x32xf32>
      %cst_19 = arith.constant dense<0.000000e+00> : vector<2x32xf32>
      %83 = tpu.matmul %81, %82, %cst_19 {dimension_numbers = #tpu.dot_dimension_numbers<[1], [0], [0], [1], [0, 0, 1, 1], [], []>} : vector<2x256xf32>, vector<256x32xf32>, vector<2x32xf32> -> vector<2x32xf32>
      %c0_20 = arith.constant 0 : index
      %c0_21 = arith.constant 0 : index
      %c0_22 = arith.constant 0 : index
      %84 = vector.load %arg12[%c0_20, %c0_21, %c0_22] : memref<1x2x32xf32, #tpu.memory_space<vmem>>, vector<1x2x32xf32>
      %85 = vector.shape_cast %84 : vector<1x2x32xf32> to vector<2x32xf32>
      %86 = vector.shape_cast %83 : vector<2x32xf32> to vector<1x2x32xf32>
      tpu.vector_store %arg12[%c0_20, %c0_21, %c0_22], %86 {strides = array<i32>} : memref<1x2x32xf32, #tpu.memory_space<vmem>>, vector<1x2x32xf32>,
    } else {
    }
    return
  }
  func.func @transform_0(%arg0: i32, %arg1: i32) -> (i32, i32, i32) {
    %c1_i32 = arith.constant 1 : i32
    %0 = arith.muli %arg0, %c1_i32 : i32
    %1 = arith.addi %0, %arg1 : i32
    %c0_i32 = arith.constant 0 : i32
    %c0_i32_0 = arith.constant 0 : i32
    %c0_i32_1 = arith.constant 0 : i32
    return %c0_i32, %c0_i32_0, %1 : i32, i32, i32
  }
  func.func @transform_1(%arg0: i32, %arg1: i32) -> (i32, i32) {
    %c0_i32 = arith.constant 0 : i32
    %c0_i32_0 = arith.constant 0 : i32
    %c0_i32_1 = arith.constant 0 : i32
    return %c0_i32, %c0_i32_0 : i32, i32
  }
  func.func @transform_2(%arg0: i32, %arg1: i32) -> (i32, i32) {
    %c0_i32 = arith.constant 0 : i32
    %c0_i32_0 = arith.constant 0 : i32
    %c0_i32_1 = arith.constant 0 : i32
    return %c0_i32, %c0_i32_0 : i32, i32
  }
  func.func @transform_3(%arg0: i32, %arg1: i32) -> (i32, i32) {
    %c0_i32 = arith.constant 0 : i32
    %c0_i32_0 = arith.constant 0 : i32
    %c0_i32_1 = arith.constant 0 : i32
    return %c0_i32, %c0_i32_0 : i32, i32
  }
  func.func @transform_4(%arg0: i32, %arg1: i32) -> (i32, i32) {
    %c0_i32 = arith.constant 0 : i32
    %c0_i32_0 = arith.constant 0 : i32
    %c0_i32_1 = arith.constant 0 : i32
    return %c0_i32, %c0_i32_0 : i32, i32
  }
  func.func @transform_5(%arg0: i32, %arg1: i32) -> (i32, i32) {
    %c0_i32 = arith.constant 0 : i32
    %c0_i32_0 = arith.constant 0 : i32
    %c0_i32_1 = arith.constant 0 : i32
    return %c0_i32, %c0_i32_0 : i32, i32
  }
  func.func @transform_6(%arg0: i32, %arg1: i32) -> (i32, i32) {
    %c0_i32 = arith.constant 0 : i32
    %c0_i32_0 = arith.constant 0 : i32
    %c0_i32_1 = arith.constant 0 : i32
    return %c0_i32, %c0_i32_0 : i32, i32
  }
  func.func @transform_7(%arg0: i32, %arg1: i32) -> (i32, i32) {
    %c0_i32 = arith.constant 0 : i32
    %c0_i32_0 = arith.constant 0 : i32
    %c0_i32_1 = arith.constant 0 : i32
    return %c0_i32, %c0_i32_0 : i32, i32
  }
  func.func @transform_8(%arg0: i32, %arg1: i32) -> (i32, i32) {
    %c0_i32 = arith.constant 0 : i32
    %c0_i32_0 = arith.constant 0 : i32
    %c0_i32_1 = arith.constant 0 : i32
    return %c0_i32, %c0_i32_0 : i32, i32
  }
  func.func @transform_9(%arg0: i32, %arg1: i32) -> (i32, i32) {
    %c0_i32 = arith.constant 0 : i32
    %c0_i32_0 = arith.constant 0 : i32
    return %arg0, %c0_i32 : i32, i32
  }
  func.func @transform_10(%arg0: i32, %arg1: i32) -> (i32, i32, i32) {
    %c0_i32 = arith.constant 0 : i32
    %c0_i32_0 = arith.constant 0 : i32
    %c0_i32_1 = arith.constant 0 : i32
    return %arg0, %c0_i32, %c0_i32_0 : i32, i32, i32
  }
}

</mosaic_0001>

<llo_original>
// kernel: tpu_custom_call.1
$region0: #{tpu_custom_call.1}
  #allocation0 [shape = 'u32[]', space=smem, size = 0x4, offset = 0x4, fixed_abs, tag = 'smem constant byte address 0x4 - core index']
  #allocation1 [shape = 'u32[144,128]{1,0:T(1,128)}', space=vmem, size = 0x12000, scoped, tag = 'internal scratch']
  #allocation2 [shape = 'f32[32,2]{1,0:T(8,128)}', space=vmem, size = 0x4000, scoped, tag = 'scratch operand']
  #allocation3 [shape = 'f32[2,256]{1,0:T(2,128)}', space=vmem, size = 0x800, scoped, tag = 'scratch operand']
  %s0 = inlined_call_operand.vmem [shape: f32[2,4,256], index: 0, kind: input, shape index: {}]
  %s1 = inlined_call_operand.vmem [shape: f32[32,4], index: 1, kind: input, shape index: {}]
  %s2 = inlined_call_operand.vmem [shape: f32[32,1], index: 2, kind: input, shape index: {}]
  %s3 = inlined_call_operand.vmem [shape: s32[2,3], index: 3, kind: input, shape index: {}]
  %s4 = inlined_call_operand.vmem [shape: f32[20,128], index: 4, kind: input, shape index: {}]
  %s5 = inlined_call_operand.vmem [shape: f32[1,128], index: 5, kind: input, shape index: {}]
  %s6 = inlined_call_operand.vmem [shape: f32[32,128], index: 6, kind: input, shape index: {}]
  %s7 = inlined_call_operand.vmem [shape: f32[32,32], index: 7, kind: input, shape index: {}]
  %s8 = inlined_call_operand.vmem [shape: f32[32,1], index: 8, kind: input, shape index: {}]
  %s9 = inlined_call_operand.vmem [shape: f32[256,32], index: 9, kind: input, shape index: {}]
  %s10 = inlined_call_operand.hbm [shape: f32[1,2,32], index: 10, kind: output, shape index: {}]
  %s11 = sld [smem:[#allocation0]]
  $region58: #{tpu_custom_call.1} parent=0
    _
  %s13 = ssub.s32 1, %s11
  %s14 = scalar_select 0, %s13, %s11
  $region1: #{tpu_custom_call.1} parent=0
    #allocation4 [shape = 'u8[1024]{0}', space=vmem, size = 0x400, scoped, tag = 'output window, operand 0, single buffered']
    #allocation5 [shape = 's32[1]{0}', space=sflag, size = 0x4, scoped, tag = 'scoped memory for tpu_custom_call.1']
    %15 = vsyncpa [#allocation5], 0
    // Predicated region
    $region2: #{tpu_custom_call.1} parent=1 // pred_check
      _
    $region3: #{tpu_custom_call.1} parent=1 // pred_check_branch
      %17 = sbr.rel (0) target = $region5
    $region4: #{tpu_custom_call.1} parent=1 // pred_region
      %s18 = sadd.s32 0, 0
      %s19 = smul.u32 2, %s18
      %p20 = scmp.lt.s32.totalorder %s19, 1
      %s21 = scalar_select %p20, %s19, 1
      %s22 = smul.addr %s21, 4
      %s23 = scalar_lea.vmem %s0, %s22
      %s24 = sadd.s32 0, 0
      %s25 = smul.u32 2, %s24
    $region5: #{tpu_custom_call.1} parent=1 // pred_fallthru
      _
    // Predicated region
    $region6: #{tpu_custom_call.1} parent=1 // pred_check
      _
    $region7: #{tpu_custom_call.1} parent=1 // pred_check_branch
      %27 = sbr.rel (0) target = $region9
    $region8: #{tpu_custom_call.1} parent=1 // pred_region
      _
    $region9: #{tpu_custom_call.1} parent=1 // pred_fallthru
      _
    // Predicated region
    $region10: #{tpu_custom_call.1} parent=1 // pred_check
      _
    $region11: #{tpu_custom_call.1} parent=1 // pred_check_branch
      %29 = sbr.rel (0) target = $region13
    $region12: #{tpu_custom_call.1} parent=1 // pred_region
      _
    $region13: #{tpu_custom_call.1} parent=1 // pred_fallthru
      _
    // Predicated region
    $region14: #{tpu_custom_call.1} parent=1 // pred_check
      _
    $region15: #{tpu_custom_call.1} parent=1 // pred_check_branch
      %31 = sbr.rel (0) target = $region17
    $region16: #{tpu_custom_call.1} parent=1 // pred_region
      _
    $region17: #{tpu_custom_call.1} parent=1 // pred_fallthru
      _
    // Predicated region
    $region18: #{tpu_custom_call.1} parent=1 // pred_check
      _
    $region19: #{tpu_custom_call.1} parent=1 // pred_check_branch
      %33 = sbr.rel (0) target = $region21
    $region20: #{tpu_custom_call.1} parent=1 // pred_region
      _
    $region21: #{tpu_custom_call.1} parent=1 // pred_fallthru
      _
    // Predicated region
    $region22: #{tpu_custom_call.1} parent=1 // pred_check
      _
    $region23: #{tpu_custom_call.1} parent=1 // pred_check_branch
      %35 = sbr.rel (0) target = $region25
    $region24: #{tpu_custom_call.1} parent=1 // pred_region
      _
    $region25: #{tpu_custom_call.1} parent=1 // pred_fallthru
      _
    // Predicated region
    $region26: #{tpu_custom_call.1} parent=1 // pred_check
      _
    $region27: #{tpu_custom_call.1} parent=1 // pred_check_branch
      %37 = sbr.rel (0) target = $region29
    $region28: #{tpu_custom_call.1} parent=1 // pred_region
      _
    $region29: #{tpu_custom_call.1} parent=1 // pred_fallthru
      _
    // Predicated region
    $region30: #{tpu_custom_call.1} parent=1 // pred_check
      _
    $region31: #{tpu_custom_call.1} parent=1 // pred_check_branch
      %39 = sbr.rel (0) target = $region33
    $region32: #{tpu_custom_call.1} parent=1 // pred_region
      _
    $region33: #{tpu_custom_call.1} parent=1 // pred_fallthru
      _
    // Predicated region
    $region34: #{tpu_custom_call.1} parent=1 // pred_check
      _
    $region35: #{tpu_custom_call.1} parent=1 // pred_check_branch
      %41 = sbr.rel (0) target = $region37
    $region36: #{tpu_custom_call.1} parent=1 // pred_region
      _
    $region37: #{tpu_custom_call.1} parent=1 // pred_fallthru
      _
    // Predicated region
    $region38: #{tpu_custom_call.1} parent=1 // pred_check
      _
    $region39: #{tpu_custom_call.1} parent=1 // pred_check_branch
      %43 = sbr.rel (0) target = $region41
    $region40: #{tpu_custom_call.1} parent=1 // pred_region
      _
    $region41: #{tpu_custom_call.1} parent=1 // pred_fallthru
      _
    %s44 = sadd.s32 0, 0
    %s45 = smul.u32 2, %s44
    %p46 = scmp.lt.s32.totalorder %s45, 1
    %s47 = scalar_select %p46, %s45, 1
    %s48 = smul.addr %s47, 4
    %s49 = scalar_lea.vmem %s0, %s48
    %s50 = sadd.s32 0, 0
    %s51 = smul.u32 2, %s50
    %p52 = scmp.lt.s32.totalorder %s51, 1
    %s53 = scalar_select %p52, %s51, 1
    %s54 = smul.addr %s53, 4
    %s55 = scalar_lea.vmem %s0, %s54
    %s56 = sadd.s32 0, 0
    %s57 = smul.u32 2, %s56
    %p58 = scmp.eq.s32.totalorder 0, 0
    // Predicated region
    $region42: #{tpu_custom_call.1} parent=1 // pred_check
      %p59 = pneg %p58
    $region43: #{tpu_custom_call.1} parent=1 // pred_check_branch
      %61 = sbr.rel (%p59) target = $region45
    $region44: #{tpu_custom_call.1} parent=1 // pred_region
      %v62 = vld [vmem:[%s3] sm:$0x3]
      %v63 = vld [vmem:[%s4] sm:$0xff]
      %v64 = vld [vmem:[%s4 + $0x8] sm:$0xff]
      %v65 = vld [vmem:[%s4 + $0x10] sm:$0xf]
      %v66 = vld [vmem:[%s5] sm:$0x1]
      %v67 = vld [vmem:[%s6] sm:$0xff]
      %v68 = vld [vmem:[%s6 + $0x8] sm:$0xff]
      %v69 = vld [vmem:[%s6 + $0x10] sm:$0xff]
      %v70 = vld [vmem:[%s6 + $0x18] sm:$0xff]
      %v71 = vlaneseq
      %v72 = vand.u32 %v71, 127
      %73 = vset.pattern.permute.xlu0 0
      %74 = vperm.xlu0 %73, %v62
      %v75 = vpop.permute.xlu0 %74
      %vm76 = vcmp.eq.s32.totalorder %v75, %v72
      %v77 = vsel %vm76, 1, 0
      %v78 = vcvt.s32.f32 %v77
      %vm79 = vcmask 261120
      %v81 = vsel %vm79, 0.0, 0
      %83 = vmatprep.subr.mxu0 0.0
      %84 = vmatpush1.msra.mxu0 %v67
      %85 = vmatprep.subr.mxu0 0.0
      %86 = vmatpush1.msra.mxu0 %v68
      %87 = vmatprep.subr.mxu0 0.0
      %88 = vmatpush1.msra.mxu0 %v69
      %89 = vmatprep.subr.mxu0 0.0
      %90 = vmatpush1.msra.mxu0 %v70
      %91 = vmatprep.subr.mxu0 0.0
      %92 = vmatpush1.msra.mxu0 0.0
      %93 = vmatprep.subr.mxu0 0.0
      %94 = vmatpush1.msra.mxu0 0.0
      %95 = vmatprep.subr.mxu0 0.0
      %96 = vmatpush1.msra.mxu0 0.0
      %97 = vmatprep.subr.mxu0 0.0
      %98 = vmatpush1.msra.mxu0 0.0
      %99 = vmatprep.subr.mxu0 0.0
      %100 = vmatpush1.msra.mxu0 0.0
      %101 = vmatprep.subr.mxu0 0.0
      %102 = vmatpush1.msra.mxu0 0.0
      %103 = vmatprep.subr.mxu0 0.0
      %104 = vmatpush1.msra.mxu0 0.0
      %105 = vmatprep.subr.mxu0 0.0
      %106 = vmatpush1.msra.mxu0 0.0
      %107 = vmatprep.subr.mxu0 0.0
      %108 = vmatpush1.msra.mxu0 0.0
      %109 = vmatprep.subr.mxu0 0.0
      %110 = vmatpush1.msra.mxu0 0.0
      %111 = vmatprep.subr.mxu0 0.0
      %112 = vmatpush1.msra.mxu0 0.0
      %113 = vmatprep.subr.mxu0 0.0
      %114 = vmatpush1.msra.mxu0 0.0
      %115 = vmatprep.subr.mxu0 0.0
      %116 = vmatpush1.msra.mxu0 0.0
      %117 = vmatprep.subr.mxu0 0.0
      %118 = vmatpush1.msra.mxu0 0.0
      %119 = vmatprep.subr.mxu0 0.0
      %120 = vmatpush1.msra.mxu0 0.0
      %121 = vmatprep.subr.mxu0 0.0
      %122 = vmatpush1.msra.mxu0 0.0
      %123 = vmatprep.subr.mxu0 0.0
      %124 = vmatpush1.msra.mxu0 0.0
      %125 = vmatprep.subr.mxu0 0.0
      %126 = vmatpush1.msra.mxu0 0.0
      %127 = vmatprep.subr.mxu0 0.0
      %128 = vmatpush1.msra.mxu0 0.0
      %129 = vmatprep.subr.mxu0 0.0
      %130 = vmatpush1.msra.mxu0 0.0
      %131 = vmatprep.subr.mxu0 0.0
      %132 = vmatpush1.msra.mxu0 0.0
      %133 = vmatprep.subr.mxu0 0.0
      %134 = vmatpush1.msra.mxu0 0.0
      %135 = vmatprep.subr.mxu0 0.0
      %136 = vmatpush1.msra.mxu0 0.0
      %137 = vmatprep.subr.mxu0 0.0
      %138 = vmatpush1.msra.mxu0 0.0
      %139 = vmatprep.subr.mxu0 0.0
      %140 = vmatpush1.msra.mxu0 0.0
      %141 = vmatprep.subr.mxu0 0.0
      %142 = vmatpush1.msra.mxu0 0.0
      %143 = vmatprep.subr.mxu0 0.0
      %144 = vmatpush1.msra.mxu0 0.0
      %145 = vmatprep.subr.mxu0 0.0
      %146 = vmatpush1.msra.mxu0 0.0
      %147 = vmatprep.mubr.f32.mxu0 0.0
      %148 = vmatmul.mubr.f32.gmra.mrb[0].mxu0 %v81
      %v149 = vpop.f32.mrb[0].mxu0
      %v150 = vadd.f32 0.0, %v149
      %v151 = vpop.f32.mrb[0].mxu0
      %152 = vdwg.mxu0
      %vm153 = vcmask 162816
      %v155 = vsel %vm153, %v78, 0
      %vm157 = vcmask 1043456
      %v159 = vsel %vm157, %v65, 0
      %161 = vmatprep.subr.mxu0 0.0
      %162 = vmatpush1.msra.mxu0 %v63
      %163 = vmatprep.subr.mxu0 0.0
      %164 = vmatpush1.msra.mxu0 %v64
      %165 = vmatprep.subr.mxu0 0.0
      %166 = vmatpush1.msra.mxu0 %v159
      %167 = vmatprep.subr.mxu0 0.0
      %168 = vmatpush1.msra.mxu0 0.0
      %169 = vmatprep.subr.mxu0 0.0
      %170 = vmatpush1.msra.mxu0 0.0
      %171 = vmatprep.subr.mxu0 0.0
      %172 = vmatpush1.msra.mxu0 0.0
      %173 = vmatprep.subr.mxu0 0.0
      %174 = vmatpush1.msra.mxu0 0.0
      %175 = vmatprep.subr.mxu0 0.0
      %176 = vmatpush1.msra.mxu0 0.0
      %177 = vmatprep.subr.mxu0 0.0
      %178 = vmatpush1.msra.mxu0 0.0
      %179 = vmatprep.subr.mxu0 0.0
      %180 = vmatpush1.msra.mxu0 0.0
      %181 = vmatprep.subr.mxu0 0.0
      %182 = vmatpush1.msra.mxu0 0.0
      %183 = vmatprep.subr.mxu0 0.0
      %184 = vmatpush1.msra.mxu0 0.0
      %185 = vmatprep.subr.mxu0 0.0
      %186 = vmatpush1.msra.mxu0 0.0
      %187 = vmatprep.subr.mxu0 0.0
      %188 = vmatpush1.msra.mxu0 0.0
      %189 = vmatprep.subr.mxu0 0.0
      %190 = vmatpush1.msra.mxu0 0.0
      %191 = vmatprep.subr.mxu0 0.0
      %192 = vmatpush1.msra.mxu0 0.0
      %193 = vmatprep.subr.mxu0 0.0
      %194 = vmatpush1.msra.mxu0 0.0
      %195 = vmatprep.subr.mxu0 0.0
      %196 = vmatpush1.msra.mxu0 0.0
      %197 = vmatprep.subr.mxu0 0.0
      %198 = vmatpush1.msra.mxu0 0.0
      %199 = vmatprep.subr.mxu0 0.0
      %200 = vmatpush1.msra.mxu0 0.0
      %201 = vmatprep.subr.mxu0 0.0
      %202 = vmatpush1.msra.mxu0 0.0
      %203 = vmatprep.subr.mxu0 0.0
      %204 = vmatpush1.msra.mxu0 0.0
      %205 = vmatprep.subr.mxu0 0.0
      %206 = vmatpush1.msra.mxu0 0.0
      %207 = vmatprep.subr.mxu0 0.0
      %208 = vmatpush1.msra.mxu0 0.0
      %209 = vmatprep.subr.mxu0 0.0
      %210 = vmatpush1.msra.mxu0 0.0
      %211 = vmatprep.subr.mxu0 0.0
      %212 = vmatpush1.msra.mxu0 0.0
      %213 = vmatprep.subr.mxu0 0.0
      %214 = vmatpush1.msra.mxu0 0.0
      %215 = vmatprep.subr.mxu0 0.0
      %216 = vmatpush1.msra.mxu0 0.0
      %217 = vmatprep.subr.mxu0 0.0
      %218 = vmatpush1.msra.mxu0 0.0
      %219 = vmatprep.subr.mxu0 0.0
      %220 = vmatpush1.msra.mxu0 0.0
      %221 = vmatprep.subr.mxu0 0.0
      %222 = vmatpush1.msra.mxu0 0.0
      %223 = vmatprep.subr.mxu0 0.0
      %224 = vmatpush1.msra.mxu0 0.0
      %225 = vmatprep.mubr.f32.mxu0 0.0
      %226 = vmatmul.mubr.f32.gmra.mrb[0].mxu0 %v155
      %v227 = vpop.f32.mrb[0].mxu0
      %v228 = vadd.f32 %v150, %v227
      %v229 = vpop.f32.mrb[0].mxu0
      %230 = vdwg.mxu0
      %v232 = vlaneseq
      %v233 = vshrl.u32 %v232, 7
      %v234 = vsub.s32 0, %v233
      %v235 = vrot.slane %v66, %v234
      %v237 = vadd.f32 %v228, %v235
      %v238 = vxor.u32 %v237, 2147483648
      %v239 = vmul.f32 %v238, 1.442695
      %v240 = vpow.pop %v239
      %v241 = vadd.f32 %v240, 1.0
      %v242 = vrcp.pop %v241
      %v243 = vmul.f32 1.0, %v242
      %v244 = vtanh.pop %v237
      %v245 = vmul.f32 %v243, 0.0
      %247 = vrot.lane.b32.xlu0 %v244, 64
      %v248 = vpop.permute.xlu0 %247
      %v250 = vmul.f32 %v243, %v248
      %252 = vrot.lane.b32.xlu0 %v250, 32
      %v253 = vpop.permute.xlu0 %252
      %v255 = vadd.f32 %v245, %v253
      %v256 = vtanh.pop %v255
      %258 = vrot.lane.b32.xlu0 %v256, 64
      %v259 = vpop.permute.xlu0 %258
      %v261 = vmul.f32 %v243, %v259
      %262 = vset.pattern.permute.xlu0 1
      %263 = vperm.xlu0 %262, %v62
      %v264 = vpop.permute.xlu0 %263
      %vm265 = vcmp.eq.s32.totalorder %v264, %v72
      %v266 = vsel %vm265, 1, 0
      %v267 = vcvt.s32.f32 %v266
      %269 = vrot.lane.b32.xlu0 %v261, 32
      %v270 = vpop.permute.xlu0 %269
      %v271 = vsel %vm79, %v270, 0
      %273 = vmatprep.subr.mxu0 0.0
      %274 = vmatpush1.msra.mxu0 %v67
      %275 = vmatprep.subr.mxu0 0.0
      %276 = vmatpush1.msra.mxu0 %v68
      %277 = vmatprep.subr.mxu0 0.0
      %278 = vmatpush1.msra.mxu0 %v69
      %279 = vmatprep.subr.mxu0 0.0
      %280 = vmatpush1.msra.mxu0 %v70
      %281 = vmatprep.subr.mxu0 0.0
      %282 = vmatpush1.msra.mxu0 0.0
      %283 = vmatprep.subr.mxu0 0.0
      %284 = vmatpush1.msra.mxu0 0.0
      %285 = vmatprep.subr.mxu0 0.0
      %286 = vmatpush1.msra.mxu0 0.0
      %287 = vmatprep.subr.mxu0 0.0
      %288 = vmatpush1.msra.mxu0 0.0
      %289 = vmatprep.subr.mxu0 0.0
      %290 = vmatpush1.msra.mxu0 0.0
      %291 = vmatprep.subr.mxu0 0.0
      %292 = vmatpush1.msra.mxu0 0.0
      %293 = vmatprep.subr.mxu0 0.0
      %294 = vmatpush1.msra.mxu0 0.0
      %295 = vmatprep.subr.mxu0 0.0
      %296 = vmatpush1.msra.mxu0 0.0
      %297 = vmatprep.subr.mxu0 0.0
      %298 = vmatpush1.msra.mxu0 0.0
      %299 = vmatprep.subr.mxu0 0.0
      %300 = vmatpush1.msra.mxu0 0.0
      %301 = vmatprep.subr.mxu0 0.0
      %302 = vmatpush1.msra.mxu0 0.0
      %303 = vmatprep.subr.mxu0 0.0
      %304 = vmatpush1.msra.mxu0 0.0
      %305 = vmatprep.subr.mxu0 0.0
      %306 = vmatpush1.msra.mxu0 0.0
      %307 = vmatprep.subr.mxu0 0.0
      %308 = vmatpush1.msra.mxu0 0.0
      %309 = vmatprep.subr.mxu0 0.0
      %310 = vmatpush1.msra.mxu0 0.0
      %311 = vmatprep.subr.mxu0 0.0
      %312 = vmatpush1.msra.mxu0 0.0
      %313 = vmatprep.subr.mxu0 0.0
      %314 = vmatpush1.msra.mxu0 0.0
      %315 = vmatprep.subr.mxu0 0.0
      %316 = vmatpush1.msra.mxu0 0.0
      %317 = vmatprep.subr.mxu0 0.0
      %318 = vmatpush1.msra.mxu0 0.0
      %319 = vmatprep.subr.mxu0 0.0
      %320 = vmatpush1.msra.mxu0 0.0
      %321 = vmatprep.subr.mxu0 0.0
      %322 = vmatpush1.msra.mxu0 0.0
      %323 = vmatprep.subr.mxu0 0.0
      %324 = vmatpush1.msra.mxu0 0.0
      %325 = vmatprep.subr.mxu0 0.0
      %326 = vmatpush1.msra.mxu0 0.0
      %327 = vmatprep.subr.mxu0 0.0
      %328 = vmatpush1.msra.mxu0 0.0
      %329 = vmatprep.subr.mxu0 0.0
      %330 = vmatpush1.msra.mxu0 0.0
      %331 = vmatprep.subr.mxu0 0.0
      %332 = vmatpush1.msra.mxu0 0.0
      %333 = vmatprep.subr.mxu0 0.0
      %334 = vmatpush1.msra.mxu0 0.0
      %335 = vmatprep.subr.mxu0 0.0
      %336 = vmatpush1.msra.mxu0 0.0
      %337 = vmatprep.mubr.f32.mxu0 0.0
      %338 = vmatmul.mubr.f32.gmra.mrb[0].mxu0 %v271
      %v339 = vpop.f32.mrb[0].mxu0
      %v340 = vadd.f32 0.0, %v339
      %v341 = vpop.f32.mrb[0].mxu0
      %342 = vdwg.mxu0
      %v344 = vsel %vm153, %v267, 0
      %346 = vmatprep.subr.mxu0 0.0
      %347 = vmatpush1.msra.mxu0 %v63
      %348 = vmatprep.subr.mxu0 0.0
      %349 = vmatpush1.msra.mxu0 %v64
      %350 = vmatprep.subr.mxu0 0.0
      %351 = vmatpush1.msra.mxu0 %v159
      %352 = vmatprep.subr.mxu0 0.0
      %353 = vmatpush1.msra.mxu0 0.0
      %354 = vmatprep.subr.mxu0 0.0
      %355 = vmatpush1.msra.mxu0 0.0
      %356 = vmatprep.subr.mxu0 0.0
      %357 = vmatpush1.msra.mxu0 0.0
      %358 = vmatprep.subr.mxu0 0.0
      %359 = vmatpush1.msra.mxu0 0.0
      %360 = vmatprep.subr.mxu0 0.0
      %361 = vmatpush1.msra.mxu0 0.0
      %362 = vmatprep.subr.mxu0 0.0
      %363 = vmatpush1.msra.mxu0 0.0
      %364 = vmatprep.subr.mxu0 0.0
      %365 = vmatpush1.msra.mxu0 0.0
      %366 = vmatprep.subr.mxu0 0.0
      %367 = vmatpush1.msra.mxu0 0.0
      %368 = vmatprep.subr.mxu0 0.0
      %369 = vmatpush1.msra.mxu0 0.0
      %370 = vmatprep.subr.mxu0 0.0
      %371 = vmatpush1.msra.mxu0 0.0
      %372 = vmatprep.subr.mxu0 0.0
      %373 = vmatpush1.msra.mxu0 0.0
      %374 = vmatprep.subr.mxu0 0.0
      %375 = vmatpush1.msra.mxu0 0.0
      %376 = vmatprep.subr.mxu0 0.0
      %377 = vmatpush1.msra.mxu0 0.0
      %378 = vmatprep.subr.mxu0 0.0
      %379 = vmatpush1.msra.mxu0 0.0
      %380 = vmatprep.subr.mxu0 0.0
      %381 = vmatpush1.msra.mxu0 0.0
      %382 = vmatprep.subr.mxu0 0.0
      %383 = vmatpush1.msra.mxu0 0.0
      %384 = vmatprep.subr.mxu0 0.0
      %385 = vmatpush1.msra.mxu0 0.0
      %386 = vmatprep.subr.mxu0 0.0
      %387 = vmatpush1.msra.mxu0 0.0
      %388 = vmatprep.subr.mxu0 0.0
      %389 = vmatpush1.msra.mxu0 0.0
      %390 = vmatprep.subr.mxu0 0.0
      %391 = vmatpush1.msra.mxu0 0.0
      %392 = vmatprep.subr.mxu0 0.0
      %393 = vmatpush1.msra.mxu0 0.0
      %394 = vmatprep.subr.mxu0 0.0
      %395 = vmatpush1.msra.mxu0 0.0
      %396 = vmatprep.subr.mxu0 0.0
      %397 = vmatpush1.msra.mxu0 0.0
      %398 = vmatprep.subr.mxu0 0.0
      %399 = vmatpush1.msra.mxu0 0.0
      %400 = vmatprep.subr.mxu0 0.0
      %401 = vmatpush1.msra.mxu0 0.0
      %402 = vmatprep.subr.mxu0 0.0
      %403 = vmatpush1.msra.mxu0 0.0
      %404 = vmatprep.subr.mxu0 0.0
      %405 = vmatpush1.msra.mxu0 0.0
      %406 = vmatprep.subr.mxu0 0.0
      %407 = vmatpush1.msra.mxu0 0.0
      %408 = vmatprep.subr.mxu0 0.0
      %409 = vmatpush1.msra.mxu0 0.0
      %410 = vmatprep.mubr.f32.mxu0 0.0
      %411 = vmatmul.mubr.f32.gmra.mrb[0].mxu0 %v344
      %v412 = vpop.f32.mrb[0].mxu0
      %v413 = vadd.f32 %v340, %v412
      %v414 = vpop.f32.mrb[0].mxu0
      %415 = vdwg.mxu0
      %v416 = vadd.f32 %v413, %v235
      %v417 = vxor.u32 %v416, 2147483648
      %v418 = vmul.f32 %v417, 1.442695
      %v419 = vpow.pop %v418
      %v420 = vadd.f32 %v419, 1.0
      %v421 = vrcp.pop %v420
      %v422 = vmul.f32 1.0, %v421
      %v423 = vtanh.pop %v416
      %v424 = vmul.f32 %v422, %v255
      %426 = vrot.lane.b32.xlu0 %v423, 64
      %v427 = vpop.permute.xlu0 %426
      %v429 = vmul.f32 %v422, %v427
      %431 = vrot.lane.b32.xlu0 %v429, 32
      %v432 = vpop.permute.xlu0 %431
      %v434 = vadd.f32 %v424, %v432
      %v435 = vtanh.pop %v434
      %437 = vrot.lane.b32.xlu0 %v435, 64
      %v438 = vpop.permute.xlu0 %437
      %v440 = vmul.f32 %v422, %v438
      %441 = vset.pattern.permute.xlu0 2
      %442 = vperm.xlu0 %441, %v62
      %v443 = vpop.permute.xlu0 %442
      %vm444 = vcmp.eq.s32.totalorder %v443, %v72
      %v445 = vsel %vm444, 1, 0
      %v446 = vcvt.s32.f32 %v445
      %448 = vrot.lane.b32.xlu0 %v440, 32
      %v449 = vpop.permute.xlu0 %448
      %v450 = vsel %vm79, %v449, 0
      %452 = vmatprep.subr.mxu0 0.0
      %453 = vmatpush1.msra.mxu0 %v67
      %454 = vmatprep.subr.mxu0 0.0
      %455 = vmatpush1.msra.mxu0 %v68
      %456 = vmatprep.subr.mxu0 0.0
      %457 = vmatpush1.msra.mxu0 %v69
      %458 = vmatprep.subr.mxu0 0.0
      %459 = vmatpush1.msra.mxu0 %v70
      %460 = vmatprep.subr.mxu0 0.0
      %461 = vmatpush1.msra.mxu0 0.0
      %462 = vmatprep.subr.mxu0 0.0
      %463 = vmatpush1.msra.mxu0 0.0
      %464 = vmatprep.subr.mxu0 0.0
      %465 = vmatpush1.msra.mxu0 0.0
      %466 = vmatprep.subr.mxu0 0.0
      %467 = vmatpush1.msra.mxu0 0.0
      %468 = vmatprep.subr.mxu0 0.0
      %469 = vmatpush1.msra.mxu0 0.0
      %470 = vmatprep.subr.mxu0 0.0
      %471 = vmatpush1.msra.mxu0 0.0
      %472 = vmatprep.subr.mxu0 0.0
      %473 = vmatpush1.msra.mxu0 0.0
      %474 = vmatprep.subr.mxu0 0.0
      %475 = vmatpush1.msra.mxu0 0.0
      %476 = vmatprep.subr.mxu0 0.0
      %477 = vmatpush1.msra.mxu0 0.0
      %478 = vmatprep.subr.mxu0 0.0
      %479 = vmatpush1.msra.mxu0 0.0
      %480 = vmatprep.subr.mxu0 0.0
      %481 = vmatpush1.msra.mxu0 0.0
      %482 = vmatprep.subr.mxu0 0.0
      %483 = vmatpush1.msra.mxu0 0.0
      %484 = vmatprep.subr.mxu0 0.0
      %485 = vmatpush1.msra.mxu0 0.0
      %486 = vmatprep.subr.mxu0 0.0
      %487 = vmatpush1.msra.mxu0 0.0
      %488 = vmatprep.subr.mxu0 0.0
      %489 = vmatpush1.msra.mxu0 0.0
      %490 = vmatprep.subr.mxu0 0.0
      %491 = vmatpush1.msra.mxu0 0.0
      %492 = vmatprep.subr.mxu0 0.0
      %493 = vmatpush1.msra.mxu0 0.0
      %494 = vmatprep.subr.mxu0 0.0
      %495 = vmatpush1.msra.mxu0 0.0
      %496 = vmatprep.subr.mxu0 0.0
      %497 = vmatpush1.msra.mxu0 0.0
      %498 = vmatprep.subr.mxu0 0.0
      %499 = vmatpush1.msra.mxu0 0.0
      %500 = vmatprep.subr.mxu0 0.0
      %501 = vmatpush1.msra.mxu0 0.0
      %502 = vmatprep.subr.mxu0 0.0
      %503 = vmatpush1.msra.mxu0 0.0
      %504 = vmatprep.subr.mxu0 0.0
      %505 = vmatpush1.msra.mxu0 0.0
      %506 = vmatprep.subr.mxu0 0.0
      %507 = vmatpush1.msra.mxu0 0.0
      %508 = vmatprep.subr.mxu0 0.0
      %509 = vmatpush1.msra.mxu0 0.0
      %510 = vmatprep.subr.mxu0 0.0
      %511 = vmatpush1.msra.mxu0 0.0
      %512 = vmatprep.subr.mxu0 0.0
      %513 = vmatpush1.msra.mxu0 0.0
      %514 = vmatprep.subr.mxu0 0.0
      %515 = vmatpush1.msra.mxu0 0.0
      %516 = vmatprep.mubr.f32.mxu0 0.0
      %517 = vmatmul.mubr.f32.gmra.mrb[0].mxu0 %v450
      %v518 = vpop.f32.mrb[0].mxu0
      %v519 = vadd.f32 0.0, %v518
      %v520 = vpop.f32.mrb[0].mxu0
      %521 = vdwg.mxu0
      %v523 = vsel %vm153, %v446, 0
      %525 = vmatprep.subr.mxu0 0.0
      %526 = vmatpush1.msra.mxu0 %v63
      %527 = vmatprep.subr.mxu0 0.0
      %528 = vmatpush1.msra.mxu0 %v64
      %529 = vmatprep.subr.mxu0 0.0
      %530 = vmatpush1.msra.mxu0 %v159
      %531 = vmatprep.subr.mxu0 0.0
      %532 = vmatpush1.msra.mxu0 0.0
      %533 = vmatprep.subr.mxu0 0.0
      %534 = vmatpush1.msra.mxu0 0.0
      %535 = vmatprep.subr.mxu0 0.0
      %536 = vmatpush1.msra.mxu0 0.0
      %537 = vmatprep.subr.mxu0 0.0
      %538 = vmatpush1.msra.mxu0 0.0
      %539 = vmatprep.subr.mxu0 0.0
      %540 = vmatpush1.msra.mxu0 0.0
      %541 = vmatprep.subr.mxu0 0.0
      %542 = vmatpush1.msra.mxu0 0.0
      %543 = vmatprep.subr.mxu0 0.0
      %544 = vmatpush1.msra.mxu0 0.0
      %545 = vmatprep.subr.mxu0 0.0
      %546 = vmatpush1.msra.mxu0 0.0
      %547 = vmatprep.subr.mxu0 0.0
      %548 = vmatpush1.msra.mxu0 0.0
      %549 = vmatprep.subr.mxu0 0.0
      %550 = vmatpush1.msra.mxu0 0.0
      %551 = vmatprep.subr.mxu0 0.0
      %552 = vmatpush1.msra.mxu0 0.0
      %553 = vmatprep.subr.mxu0 0.0
      %554 = vmatpush1.msra.mxu0 0.0
      %555 = vmatprep.subr.mxu0 0.0
      %556 = vmatpush1.msra.mxu0 0.0
      %557 = vmatprep.subr.mxu0 0.0
      %558 = vmatpush1.msra.mxu0 0.0
      %559 = vmatprep.subr.mxu0 0.0
      %560 = vmatpush1.msra.mxu0 0.0
      %561 = vmatprep.subr.mxu0 0.0
      %562 = vmatpush1.msra.mxu0 0.0
      %563 = vmatprep.subr.mxu0 0.0
      %564 = vmatpush1.msra.mxu0 0.0
      %565 = vmatprep.subr.mxu0 0.0
      %566 = vmatpush1.msra.mxu0 0.0
      %567 = vmatprep.subr.mxu0 0.0
      %568 = vmatpush1.msra.mxu0 0.0
      %569 = vmatprep.subr.mxu0 0.0
      %570 = vmatpush1.msra.mxu0 0.0
      %571 = vmatprep.subr.mxu0 0.0
      %572 = vmatpush1.msra.mxu0 0.0
      %573 = vmatprep.subr.mxu0 0.0
      %574 = vmatpush1.msra.mxu0 0.0
      %575 = vmatprep.subr.mxu0 0.0
      %576 = vmatpush1.msra.mxu0 0.0
      %577 = vmatprep.subr.mxu0 0.0
      %578 = vmatpush1.msra.mxu0 0.0
      %579 = vmatprep.subr.mxu0 0.0
      %580 = vmatpush1.msra.mxu0 0.0
      %581 = vmatprep.subr.mxu0 0.0
      %582 = vmatpush1.msra.mxu0 0.0
      %583 = vmatprep.subr.mxu0 0.0
      %584 = vmatpush1.msra.mxu0 0.0
      %585 = vmatprep.subr.mxu0 0.0
      %586 = vmatpush1.msra.mxu0 0.0
      %587 = vmatprep.subr.mxu0 0.0
      %588 = vmatpush1.msra.mxu0 0.0
      %589 = vmatprep.mubr.f32.mxu0 0.0
      %590 = vmatmul.mubr.f32.gmra.mrb[0].mxu0 %v523
      %v591 = vpop.f32.mrb[0].mxu0
      %v592 = vadd.f32 %v519, %v591
      %v593 = vpop.f32.mrb[0].mxu0
      %594 = vdwg.mxu0
      %v595 = vadd.f32 %v592, %v235
      %v596 = vxor.u32 %v595, 2147483648
      %v597 = vmul.f32 %v596, 1.442695
      %v598 = vpow.pop %v597
      %v599 = vadd.f32 %v598, 1.0
      %v600 = vrcp.pop %v599
      %v601 = vmul.f32 1.0, %v600
      %v602 = vtanh.pop %v595
      %v603 = vmul.f32 %v601, %v434
      %605 = vrot.lane.b32.xlu0 %v602, 64
      %v606 = vpop.permute.xlu0 %605
      %v608 = vmul.f32 %v601, %v606
      %610 = vrot.lane.b32.xlu0 %v608, 32
      %v611 = vpop.permute.xlu0 %610
      %v613 = vadd.f32 %v603, %v611
      %v614 = vtanh.pop %v613
      %616 = vrot.lane.b32.xlu0 %v614, 64
      %v617 = vpop.permute.xlu0 %616
      %v619 = vmul.f32 %v601, %v617
      %v620 = vld [vmem:[%s7] sm:$0xff]
      %v621 = vld [vmem:[%s7 + $0x8] sm:$0xff]
      %v622 = vld [vmem:[%s7 + $0x10] sm:$0xff]
      %v623 = vld [vmem:[%s7 + $0x18] sm:$0xff]
      %v624 = vld [vmem:[%s8] sm:$0xff]
      %v625 = vld [vmem:[%s8 + $0x8] sm:$0xff]
      %v626 = vld [vmem:[%s8 + $0x10] sm:$0xff]
      %v627 = vld [vmem:[%s8 + $0x18] sm:$0xff]
      %629 = vset.pattern.permute.xlu0 0
      %630 = vperm.xlu0 %629, %v624
      %v631 = vpop.permute.xlu0 %630
      %634 = vset.pattern.permute.xlu0 0
      %635 = vperm.xlu0 %634, %v625
      %v636 = vpop.permute.xlu0 %635
      %639 = vset.pattern.permute.xlu0 0
      %640 = vperm.xlu0 %639, %v626
      %v641 = vpop.permute.xlu0 %640
      %644 = vset.pattern.permute.xlu0 0
      %645 = vperm.xlu0 %644, %v627
      %v646 = vpop.permute.xlu0 %645
      %649 = vrot.lane.b32.xlu0 %v619, 32
      %v650 = vpop.permute.xlu0 %649
      %v652 = vsel %vm79, %v620, 0
      %v655 = vsel %vm79, %v621, 0
      %v658 = vsel %vm79, %v622, 0
      %v661 = vsel %vm79, %v623, 0
      %v663 = vsel %vm79, %v650, 0
      %665 = vmatprep.subr.mxu0 0.0
      %666 = vmatpush1.xpose.msra.mxu0 %v663
      %667 = vmatprep.subr.mxu0 0.0
      %668 = vmatpush1.xpose.msra.mxu0 0.0
      %669 = vmatprep.subr.mxu0 0.0
      %670 = vmatpush1.xpose.msra.mxu0 0.0
      %671 = vmatprep.subr.mxu0 0.0
      %672 = vmatpush1.xpose.msra.mxu0 0.0
      %673 = vmatprep.subr.mxu0 0.0
      %674 = vmatpush1.xpose.msra.mxu0 0.0
      %675 = vmatprep.subr.mxu0 0.0
      %676 = vmatpush1.xpose.msra.mxu0 0.0
      %677 = vmatprep.subr.mxu0 0.0
      %678 = vmatpush1.xpose.msra.mxu0 0.0
      %679 = vmatprep.subr.mxu0 0.0
      %680 = vmatpush1.xpose.msra.mxu0 0.0
      %681 = vmatprep.subr.mxu0 0.0
      %682 = vmatpush1.xpose.msra.mxu0 0.0
      %683 = vmatprep.subr.mxu0 0.0
      %684 = vmatpush1.xpose.msra.mxu0 0.0
      %685 = vmatprep.subr.mxu0 0.0
      %686 = vmatpush1.xpose.msra.mxu0 0.0
      %687 = vmatprep.subr.mxu0 0.0
      %688 = vmatpush1.xpose.msra.mxu0 0.0
      %689 = vmatprep.subr.mxu0 0.0
      %690 = vmatpush1.xpose.msra.mxu0 0.0
      %691 = vmatprep.subr.mxu0 0.0
      %692 = vmatpush1.xpose.msra.mxu0 0.0
      %693 = vmatprep.subr.mxu0 0.0
      %694 = vmatpush1.xpose.msra.mxu0 0.0
      %695 = vmatprep.subr.mxu0 0.0
      %696 = vmatpush1.xpose.msra.mxu0 0.0
      %697 = vmatprep.subr.mxu0 0.0
      %698 = vmatpush1.xpose.msra.mxu0 0.0
      %699 = vmatprep.subr.mxu0 0.0
      %700 = vmatpush1.xpose.msra.mxu0 0.0
      %701 = vmatprep.subr.mxu0 0.0
      %702 = vmatpush1.xpose.msra.mxu0 0.0
      %703 = vmatprep.subr.mxu0 0.0
      %704 = vmatpush1.xpose.msra.mxu0 0.0
      %705 = vmatprep.subr.mxu0 0.0
      %706 = vmatpush1.xpose.msra.mxu0 0.0
      %707 = vmatprep.subr.mxu0 0.0
      %708 = vmatpush1.xpose.msra.mxu0 0.0
      %709 = vmatprep.subr.mxu0 0.0
      %710 = vmatpush1.xpose.msra.mxu0 0.0
      %711 = vmatprep.subr.mxu0 0.0
      %712 = vmatpush1.xpose.msra.mxu0 0.0
      %713 = vmatprep.subr.mxu0 0.0
      %714 = vmatpush1.xpose.msra.mxu0 0.0
      %715 = vmatprep.subr.mxu0 0.0
      %716 = vmatpush1.xpose.msra.mxu0 0.0
      %717 = vmatprep.subr.mxu0 0.0
      %718 = vmatpush1.xpose.msra.mxu0 0.0
      %719 = vmatprep.subr.mxu0 0.0
      %720 = vmatpush1.xpose.msra.mxu0 0.0
      %721 = vmatprep.subr.mxu0 0.0
      %722 = vmatpush1.xpose.msra.mxu0 0.0
      %723 = vmatprep.subr.mxu0 0.0
      %724 = vmatpush1.xpose.msra.mxu0 0.0
      %725 = vmatprep.subr.mxu0 0.0
      %726 = vmatpush1.xpose.msra.mxu0 0.0
      %727 = vmatprep.subr.mxu0 0.0
      %728 = vmatpush1.xpose.msra.mxu0 0.0
      %729 = vmatprep.mubr.f32.mxu0 0.0
      %730 = vmatmul.mubr.f32.gmra.mrb[0].mxu0 %v652
      %v731 = vpop.f32.mrb[0].mxu0
      %v732 = vadd.f32 %v631, %v731
      %v733 = vpop.f32.mrb[0].mxu0
      %734 = vmatprep.mubr.f32.mxu0 0.0
      %735 = vmatmul.mubr.f32.gmra.mrb[0].mxu0 %v655
      %v736 = vpop.f32.mrb[0].mxu0
      %v737 = vadd.f32 %v636, %v736
      %v738 = vpop.f32.mrb[0].mxu0
      %739 = vmatprep.mubr.f32.mxu0 0.0
      %740 = vmatmul.mubr.f32.gmra.mrb[0].mxu0 %v658
      %v741 = vpop.f32.mrb[0].mxu0
      %v742 = vadd.f32 %v641, %v741
      %v743 = vpop.f32.mrb[0].mxu0
      %744 = vmatprep.mubr.f32.mxu0 0.0
      %745 = vmatmul.mubr.f32.gmra.mrb[0].mxu0 %v661
      %v746 = vpop.f32.mrb[0].mxu0
      %v747 = vadd.f32 %v646, %v746
      %v748 = vpop.f32.mrb[0].mxu0
      %749 = vdwg.mxu0
      %v750 = vtanh.pop %v732
      %v751 = vtanh.pop %v737
      %v752 = vtanh.pop %v742
      %v753 = vtanh.pop %v747
      %vm754 = vcmask 15360
      %755 = vst.msk [vmem:[#allocation2] sm:$0xff] %vm754, %v750
      %756 = vst.msk [vmem:[#allocation2 + $0x8] sm:$0xff] %vm754, %v751
      %757 = vst.msk [vmem:[#allocation2 + $0x10] sm:$0xff] %vm754, %v752
      %758 = vst.msk [vmem:[#allocation2 + $0x18] sm:$0xff] %vm754, %v753
    $region45: #{tpu_custom_call.1} parent=1 // pred_fallthru
      _
    %v759 = vld [vmem:[%s2] sm:$0xff]
    %v760 = vld [vmem:[%s2 + $0x8] sm:$0xff]
    %v761 = vld [vmem:[%s2 + $0x10] sm:$0xff]
    %v762 = vld [vmem:[%s2 + $0x18] sm:$0xff]
    %v763 = vld [vmem:[%s55] sm:$0xff]
    %v764 = vld [vmem:[%s55 + $0x8] sm:$0xff]
    %v765 = vld [vmem:[%s1] sm:$0xff]
    %v766 = vld [vmem:[%s1 + $0x8] sm:$0xff]
    %v767 = vld [vmem:[%s1 + $0x10] sm:$0xff]
    %v768 = vld [vmem:[%s1 + $0x18] sm:$0xff]
    %s769 = smul.u32 0, 256
    %771 = vset.pattern.permute.xlu0 0
    %772 = vperm.xlu0 %771, %v765
    %v773 = vpop.permute.xlu0 %772
    %776 = vset.pattern.permute.xlu0 0
    %777 = vperm.xlu0 %776, %v766
    %v778 = vpop.permute.xlu0 %777
    %781 = vset.pattern.permute.xlu0 0
    %782 = vperm.xlu0 %781, %v767
    %v783 = vpop.permute.xlu0 %782
    %786 = vset.pattern.permute.xlu0 0
    %787 = vperm.xlu0 %786, %v768
    %v788 = vpop.permute.xlu0 %787
    %v791 = vlaneseq
    %v792 = vshrl.u32 %v791, 7
    %v793 = vsub.s32 0, %v792
    %v794 = vrot.slane %v763, %v793
    %v795 = vlaneseq
    %v796 = vshrl.u32 %v795, 7
    %v797 = vsub.s32 4, %v796
    %v798 = vrot.slane %v763, %v797
    %v801 = vlaneseq
    %v802 = vshrl.u32 %v801, 7
    %v803 = vsub.s32 0, %v802
    %v804 = vrot.slane %v794, %v803
    %v805 = vlaneseq
    %v806 = vshrl.u32 %v805, 7
    %v807 = vsub.s32 0, %v806
    %v808 = vrot.slane %v798, %v807
    %v809 = vmul.f32 %v773, %v804
    %v810 = vmul.f32 %v773, %v808
    %v811 = vmul.f32 %v778, %v804
    %v812 = vmul.f32 %v778, %v808
    %v813 = vmul.f32 %v783, %v804
    %v814 = vmul.f32 %v783, %v808
    %v815 = vmul.f32 %v788, %v804
    %v816 = vmul.f32 %v788, %v808
    %817 = vset.pattern.permute.xlu0 1
    %818 = vperm.xlu0 %817, %v765
    %v819 = vpop.permute.xlu0 %818
    %821 = vset.pattern.permute.xlu0 1
    %822 = vperm.xlu0 %821, %v766
    %v823 = vpop.permute.xlu0 %822
    %825 = vset.pattern.permute.xlu0 1
    %826 = vperm.xlu0 %825, %v767
    %v827 = vpop.permute.xlu0 %826
    %829 = vset.pattern.permute.xlu0 1
    %830 = vperm.xlu0 %829, %v768
    %v831 = vpop.permute.xlu0 %830
    %v833 = vlaneseq
    %v834 = vshrl.u32 %v833, 7
    %v835 = vsub.s32 1, %v834
    %v836 = vrot.slane %v763, %v835
    %v837 = vlaneseq
    %v838 = vshrl.u32 %v837, 7
    %v839 = vsub.s32 5, %v838
    %v840 = vrot.slane %v763, %v839
    %v843 = vlaneseq
    %v844 = vshrl.u32 %v843, 7
    %v845 = vsub.s32 1, %v844
    %v846 = vrot.slane %v836, %v845
    %v847 = vlaneseq
    %v848 = vshrl.u32 %v847, 7
    %v849 = vsub.s32 1, %v848
    %v850 = vrot.slane %v840, %v849
    %v851 = vmul.f32 %v819, %v846
    %v852 = vmul.f32 %v819, %v850
    %v853 = vmul.f32 %v823, %v846
    %v854 = vmul.f32 %v823, %v850
    %v855 = vmul.f32 %v827, %v846
    %v856 = vmul.f32 %v827, %v850
    %v857 = vmul.f32 %v831, %v846
    %v858 = vmul.f32 %v831, %v850
    %v859 = vadd.f32 %v809, %v851
    %v860 = vadd.f32 %v810, %v852
    %v861 = vadd.f32 %v811, %v853
    %v862 = vadd.f32 %v812, %v854
    %v863 = vadd.f32 %v813, %v855
    %v864 = vadd.f32 %v814, %v856
    %v865 = vadd.f32 %v815, %v857
    %v866 = vadd.f32 %v816, %v858
    %867 = vset.pattern.permute.xlu0 2
    %868 = vperm.xlu0 %867, %v765
    %v869 = vpop.permute.xlu0 %868
    %871 = vset.pattern.permute.xlu0 2
    %872 = vperm.xlu0 %871, %v766
    %v873 = vpop.permute.xlu0 %872
    %875 = vset.pattern.permute.xlu0 2
    %876 = vperm.xlu0 %875, %v767
    %v877 = vpop.permute.xlu0 %876
    %879 = vset.pattern.permute.xlu0 2
    %880 = vperm.xlu0 %879, %v768
    %v881 = vpop.permute.xlu0 %880
    %v883 = vlaneseq
    %v884 = vshrl.u32 %v883, 7
    %v885 = vsub.s32 2, %v884
    %v886 = vrot.slane %v763, %v885
    %v887 = vlaneseq
    %v888 = vshrl.u32 %v887, 7
    %v889 = vsub.s32 6, %v888
    %v890 = vrot.slane %v763, %v889
    %v893 = vlaneseq
    %v894 = vshrl.u32 %v893, 7
    %v895 = vsub.s32 2, %v894
    %v896 = vrot.slane %v886, %v895
    %v897 = vlaneseq
    %v898 = vshrl.u32 %v897, 7
    %v899 = vsub.s32 2, %v898
    %v900 = vrot.slane %v890, %v899
    %v901 = vmul.f32 %v869, %v896
    %v902 = vmul.f32 %v869, %v900
    %v903 = vmul.f32 %v873, %v896
    %v904 = vmul.f32 %v873, %v900
    %v905 = vmul.f32 %v877, %v896
    %v906 = vmul.f32 %v877, %v900
    %v907 = vmul.f32 %v881, %v896
    %v908 = vmul.f32 %v881, %v900
    %v909 = vadd.f32 %v859, %v901
    %v910 = vadd.f32 %v860, %v902
    %v911 = vadd.f32 %v861, %v903
    %v912 = vadd.f32 %v862, %v904
    %v913 = vadd.f32 %v863, %v905
    %v914 = vadd.f32 %v864, %v906
    %v915 = vadd.f32 %v865, %v907
    %v916 = vadd.f32 %v866, %v908
    %917 = vset.pattern.permute.xlu0 3
    %918 = vperm.xlu0 %917, %v765
    %v919 = vpop.permute.xlu0 %918
    %921 = vset.pattern.permute.xlu0 3
    %922 = vperm.xlu0 %921, %v766
    %v923 = vpop.permute.xlu0 %922
    %925 = vset.pattern.permute.xlu0 3
    %926 = vperm.xlu0 %925, %v767
    %v927 = vpop.permute.xlu0 %926
    %929 = vset.pattern.permute.xlu0 3
    %930 = vperm.xlu0 %929, %v768
    %v931 = vpop.permute.xlu0 %930
    %v933 = vlaneseq
    %v934 = vshrl.u32 %v933, 7
    %v935 = vsub.s32 3, %v934
    %v936 = vrot.slane %v763, %v935
    %v937 = vlaneseq
    %v938 = vshrl.u32 %v937, 7
    %v939 = vsub.s32 7, %v938
    %v940 = vrot.slane %v763, %v939
    %v943 = vlaneseq
    %v944 = vshrl.u32 %v943, 7
    %v945 = vsub.s32 3, %v944
    %v946 = vrot.slane %v936, %v945
    %v947 = vlaneseq
    %v948 = vshrl.u32 %v947, 7
    %v949 = vsub.s32 3, %v948
    %v950 = vrot.slane %v940, %v949
    %v951 = vmul.f32 %v919, %v946
    %v952 = vmul.f32 %v919, %v950
    %v953 = vmul.f32 %v923, %v946
    %v954 = vmul.f32 %v923, %v950
    %v955 = vmul.f32 %v927, %v946
    %v956 = vmul.f32 %v927, %v950
    %v957 = vmul.f32 %v931, %v946
    %v958 = vmul.f32 %v931, %v950
    %v959 = vadd.f32 %v909, %v951
    %v960 = vadd.f32 %v910, %v952
    %v961 = vadd.f32 %v911, %v953
    %v962 = vadd.f32 %v912, %v954
    %v963 = vadd.f32 %v913, %v955
    %v964 = vadd.f32 %v914, %v956
    %v965 = vadd.f32 %v915, %v957
    %v966 = vadd.f32 %v916, %v958
    %968 = vset.pattern.permute.xlu0 0
    %969 = vperm.xlu0 %968, %v759
    %v970 = vpop.permute.xlu0 %969
    %973 = vset.pattern.permute.xlu0 0
    %974 = vperm.xlu0 %973, %v760
    %v975 = vpop.permute.xlu0 %974
    %978 = vset.pattern.permute.xlu0 0
    %979 = vperm.xlu0 %978, %v761
    %v980 = vpop.permute.xlu0 %979
    %983 = vset.pattern.permute.xlu0 0
    %984 = vperm.xlu0 %983, %v762
    %v985 = vpop.permute.xlu0 %984
    %v987 = vadd.f32 %v959, %v970
    %v988 = vadd.f32 %v960, %v970
    %v989 = vadd.f32 %v961, %v975
    %v990 = vadd.f32 %v962, %v975
    %v991 = vadd.f32 %v963, %v980
    %v992 = vadd.f32 %v964, %v980
    %v993 = vadd.f32 %v965, %v985
    %v994 = vadd.f32 %v966, %v985
    %v995 = vtanh.pop %v987
    %v996 = vtanh.pop %v988
    %v997 = vtanh.pop %v989
    %v998 = vtanh.pop %v990
    %v999 = vtanh.pop %v991
    %v1000 = vtanh.pop %v992
    %v1001 = vtanh.pop %v993
    %v1002 = vtanh.pop %v994
    %v1003 = vld [vmem:[#allocation2] sm:$0xff]
    %v1004 = vld [vmem:[#allocation2 + $0x8] sm:$0xff]
    %v1005 = vld [vmem:[#allocation2 + $0x10] sm:$0xff]
    %v1006 = vld [vmem:[#allocation2 + $0x18] sm:$0xff]
    %1008 = vset.pattern.permute.xlu0 0
    %1009 = vperm.xlu0 %1008, %v1003
    %v1010 = vpop.permute.xlu0 %1009
    %1013 = vset.pattern.permute.xlu0 0
    %1014 = vperm.xlu0 %1013, %v1004
    %v1015 = vpop.permute.xlu0 %1014
    %1018 = vset.pattern.permute.xlu0 0
    %1019 = vperm.xlu0 %1018, %v1005
    %v1020 = vpop.permute.xlu0 %1019
    %1023 = vset.pattern.permute.xlu0 0
    %1024 = vperm.xlu0 %1023, %v1006
    %v1025 = vpop.permute.xlu0 %1024
    %v1027 = vmul.f32 %v1010, %v995
    %v1028 = vmul.f32 %v1010, %v996
    %v1029 = vmul.f32 %v1015, %v997
    %v1030 = vmul.f32 %v1015, %v998
    %v1031 = vmul.f32 %v1020, %v999
    %v1032 = vmul.f32 %v1020, %v1000
    %v1033 = vmul.f32 %v1025, %v1001
    %v1034 = vmul.f32 %v1025, %v1002
    %v1035 = vadd.f32 %v1027, %v1029
    %v1036 = vadd.f32 %v1035, %v1031
    %v1037 = vadd.f32 %v1036, %v1033
    %v1038 = vrot.slane %v1037, 4
    %v1039 = vadd.f32 %v1037, %v1038
    %v1040 = vrot.slane %v1039, 2
    %v1041 = vadd.f32 %v1039, %v1040
    %v1042 = vrot.slane %v1041, 1
    %v1043 = vadd.f32 %v1041, %v1042
    %v1044 = vadd.f32 %v1028, %v1030
    %v1045 = vadd.f32 %v1044, %v1032
    %v1046 = vadd.f32 %v1045, %v1034
    %v1047 = vrot.slane %v1046, 4
    %v1048 = vadd.f32 %v1046, %v1047
    %v1049 = vrot.slane %v1048, 2
    %v1050 = vadd.f32 %v1048, %v1049
    %v1051 = vrot.slane %v1050, 1
    %v1052 = vadd.f32 %v1050, %v1051
    %v1055 = vcombine.low %v1043, %v1052
    %v1057 = vunpack.c.l.s4 1966171168
    %v1058 = vunpack.c.0.s8 %v1057
    %v1059 = vlaneseq
    %v1060 = vshrl.u32 %v1059, 7
    %v1061 = vsub.s32 %v1058, %v1060
    %v1062 = vrot.slane %v1055, %v1061
    %v1064 = vunpack.c.l.s4 1966171168
    %v1065 = vunpack.c.0.s8 %v1064
    %v1066 = vlaneseq
    %v1067 = vshrl.u32 %v1066, 7
    %v1068 = vsub.s32 %v1065, %v1067
    %v1069 = vrot.slane %v1062, %v1068
    %s1071 = sshra.s32 %s769, 7
    %s1072 = sand.u32 %s769, 127
    %s1073 = smul.addr %s1071, 2
    %s1074 = scalar_lea.vmem [#allocation3], %s1073
    %v1075 = vlaneseq
    %vm1076 = vcmp.ge.s32.totalorder %v1075, 0
    %vm1077 = vcmp.lt.s32.totalorder %v1075, 256
    %vm1078 = vmand %vm1076, %vm1077
    %1079 = vst.msk [vmem:[%s1074] ss:$2 sm:$0x3] %vm1078, %v1069
    %v1081 = vlaneseq
    %v1082 = vshrl.u32 %v1081, 7
    %v1083 = vsub.s32 0, %v1082
    %v1084 = vrot.slane %v764, %v1083
    %v1085 = vlaneseq
    %v1086 = vshrl.u32 %v1085, 7
    %v1087 = vsub.s32 4, %v1086
    %v1088 = vrot.slane %v764, %v1087
    %v1091 = vlaneseq
    %v1092 = vshrl.u32 %v1091, 7
    %v1093 = vsub.s32 0, %v1092
    %v1094 = vrot.slane %v1084, %v1093
    %v1095 = vlaneseq
    %v1096 = vshrl.u32 %v1095, 7
    %v1097 = vsub.s32 0, %v1096
    %v1098 = vrot.slane %v1088, %v1097
    %v1099 = vmul.f32 %v773, %v1094
    %v1100 = vmul.f32 %v773, %v1098
    %v1101 = vmul.f32 %v778, %v1094
    %v1102 = vmul.f32 %v778, %v1098
    %v1103 = vmul.f32 %v783, %v1094
    %v1104 = vmul.f32 %v783, %v1098
    %v1105 = vmul.f32 %v788, %v1094
    %v1106 = vmul.f32 %v788, %v1098
    %v1107 = vlaneseq
    %v1108 = vshrl.u32 %v1107, 7
    %v1109 = vsub.s32 1, %v1108
    %v1110 = vrot.slane %v764, %v1109
    %v1111 = vlaneseq
    %v1112 = vshrl.u32 %v1111, 7
    %v1113 = vsub.s32 5, %v1112
    %v1114 = vrot.slane %v764, %v1113
    %v1117 = vlaneseq
    %v1118 = vshrl.u32 %v1117, 7
    %v1119 = vsub.s32 1, %v1118
    %v1120 = vrot.slane %v1110, %v1119
    %v1121 = vlaneseq
    %v1122 = vshrl.u32 %v1121, 7
    %v1123 = vsub.s32 1, %v1122
    %v1124 = vrot.slane %v1114, %v1123
    %v1125 = vmul.f32 %v819, %v1120
    %v1126 = vmul.f32 %v819, %v1124
    %v1127 = vmul.f32 %v823, %v1120
    %v1128 = vmul.f32 %v823, %v1124
    %v1129 = vmul.f32 %v827, %v1120
    %v1130 = vmul.f32 %v827, %v1124
    %v1131 = vmul.f32 %v831, %v1120
    %v1132 = vmul.f32 %v831, %v1124
    %v1133 = vadd.f32 %v1099, %v1125
    %v1134 = vadd.f32 %v1100, %v1126
    %v1135 = vadd.f32 %v1101, %v1127
    %v1136 = vadd.f32 %v1102, %v1128
    %v1137 = vadd.f32 %v1103, %v1129
    %v1138 = vadd.f32 %v1104, %v1130
    %v1139 = vadd.f32 %v1105, %v1131
    %v1140 = vadd.f32 %v1106, %v1132
    %v1141 = vlaneseq
    %v1142 = vshrl.u32 %v1141, 7
    %v1143 = vsub.s32 2, %v1142
    %v1144 = vrot.slane %v764, %v1143
    %v1145 = vlaneseq
    %v1146 = vshrl.u32 %v1145, 7
    %v1147 = vsub.s32 6, %v1146
    %v1148 = vrot.slane %v764, %v1147
    %v1151 = vlaneseq
    %v1152 = vshrl.u32 %v1151, 7
    %v1153 = vsub.s32 2, %v1152
    %v1154 = vrot.slane %v1144, %v1153
    %v1155 = vlaneseq
    %v1156 = vshrl.u32 %v1155, 7
    %v1157 = vsub.s32 2, %v1156
    %v1158 = vrot.slane %v1148, %v1157
    %v1159 = vmul.f32 %v869, %v1154
    %v1160 = vmul.f32 %v869, %v1158
    %v1161 = vmul.f32 %v873, %v1154
    %v1162 = vmul.f32 %v873, %v1158
    %v1163 = vmul.f32 %v877, %v1154
    %v1164 = vmul.f32 %v877, %v1158
    %v1165 = vmul.f32 %v881, %v1154
    %v1166 = vmul.f32 %v881, %v1158
    %v1167 = vadd.f32 %v1133, %v1159
    %v1168 = vadd.f32 %v1134, %v1160
    %v1169 = vadd.f32 %v1135, %v1161
    %v1170 = vadd.f32 %v1136, %v1162
    %v1171 = vadd.f32 %v1137, %v1163
    %v1172 = vadd.f32 %v1138, %v1164
    %v1173 = vadd.f32 %v1139, %v1165
    %v1174 = vadd.f32 %v1140, %v1166
    %v1175 = vlaneseq
    %v1176 = vshrl.u32 %v1175, 7
    %v1177 = vsub.s32 3, %v1176
    %v1178 = vrot.slane %v764, %v1177
    %v1179 = vlaneseq
    %v1180 = vshrl.u32 %v1179, 7
    %v1181 = vsub.s32 7, %v1180
    %v1182 = vrot.slane %v764, %v1181
    %v1185 = vlaneseq
    %v1186 = vshrl.u32 %v1185, 7
    %v1187 = vsub.s32 3, %v1186
    %v1188 = vrot.slane %v1178, %v1187
    %v1189 = vlaneseq
    %v1190 = vshrl.u32 %v1189, 7
    %v1191 = vsub.s32 3, %v1190
    %v1192 = vrot.slane %v1182, %v1191
    %v1193 = vmul.f32 %v919, %v1188
    %v1194 = vmul.f32 %v919, %v1192
    %v1195 = vmul.f32 %v923, %v1188
    %v1196 = vmul.f32 %v923, %v1192
    %v1197 = vmul.f32 %v927, %v1188
    %v1198 = vmul.f32 %v927, %v1192
    %v1199 = vmul.f32 %v931, %v1188
    %v1200 = vmul.f32 %v931, %v1192
    %v1201 = vadd.f32 %v1167, %v1193
    %v1202 = vadd.f32 %v1168, %v1194
    %v1203 = vadd.f32 %v1169, %v1195
    %v1204 = vadd.f32 %v1170, %v1196
    %v1205 = vadd.f32 %v1171, %v1197
    %v1206 = vadd.f32 %v1172, %v1198
    %v1207 = vadd.f32 %v1173, %v1199
    %v1208 = vadd.f32 %v1174, %v1200
    %v1209 = vadd.f32 %v1201, %v970
    %v1210 = vadd.f32 %v1202, %v970
    %v1211 = vadd.f32 %v1203, %v975
    %v1212 = vadd.f32 %v1204, %v975
    %v1213 = vadd.f32 %v1205, %v980
    %v1214 = vadd.f32 %v1206, %v980
    %v1215 = vadd.f32 %v1207, %v985
    %v1216 = vadd.f32 %v1208, %v985
    %v1217 = vtanh.pop %v1209
    %v1218 = vtanh.pop %v1210
    %v1219 = vtanh.pop %v1211
    %v1220 = vtanh.pop %v1212
    %v1221 = vtanh.pop %v1213
    %v1222 = vtanh.pop %v1214
    %v1223 = vtanh.pop %v1215
    %v1224 = vtanh.pop %v1216
    %v1225 = vld [vmem:[#allocation2] sm:$0xff]
    %v1226 = vld [vmem:[#allocation2 + $0x8] sm:$0xff]
    %v1227 = vld [vmem:[#allocation2 + $0x10] sm:$0xff]
    %v1228 = vld [vmem:[#allocation2 + $0x18] sm:$0xff]
    %1230 = vset.pattern.permute.xlu0 1
    %1231 = vperm.xlu0 %1230, %v1225
    %v1232 = vpop.permute.xlu0 %1231
    %1235 = vset.pattern.permute.xlu0 1
    %1236 = vperm.xlu0 %1235, %v1226
    %v1237 = vpop.permute.xlu0 %1236
    %1240 = vset.pattern.permute.xlu0 1
    %1241 = vperm.xlu0 %1240, %v1227
    %v1242 = vpop.permute.xlu0 %1241
    %1245 = vset.pattern.permute.xlu0 1
    %1246 = vperm.xlu0 %1245, %v1228
    %v1247 = vpop.permute.xlu0 %1246
    %v1249 = vmul.f32 %v1232, %v1217
    %v1250 = vmul.f32 %v1232, %v1218
    %v1251 = vmul.f32 %v1237, %v1219
    %v1252 = vmul.f32 %v1237, %v1220
    %v1253 = vmul.f32 %v1242, %v1221
    %v1254 = vmul.f32 %v1242, %v1222
    %v1255 = vmul.f32 %v1247, %v1223
    %v1256 = vmul.f32 %v1247, %v1224
    %v1257 = vadd.f32 %v1249, %v1251
    %v1258 = vadd.f32 %v1257, %v1253
    %v1259 = vadd.f32 %v1258, %v1255
    %v1260 = vrot.slane %v1259, 4
    %v1261 = vadd.f32 %v1259, %v1260
    %v1262 = vrot.slane %v1261, 2
    %v1263 = vadd.f32 %v1261, %v1262
    %v1264 = vrot.slane %v1263, 1
    %v1265 = vadd.f32 %v1263, %v1264
    %v1266 = vadd.f32 %v1250, %v1252
    %v1267 = vadd.f32 %v1266, %v1254
    %v1268 = vadd.f32 %v1267, %v1256
    %v1269 = vrot.slane %v1268, 4
    %v1270 = vadd.f32 %v1268, %v1269
    %v1271 = vrot.slane %v1270, 2
    %v1272 = vadd.f32 %v1270, %v1271
    %v1273 = vrot.slane %v1272, 1
    %v1274 = vadd.f32 %v1272, %v1273
    %v1277 = vcombine.low %v1265, %v1274
    %v1279 = vunpack.c.l.s4 1966171168
    %v1280 = vunpack.c.0.s8 %v1279
    %v1281 = vlaneseq
    %v1282 = vshrl.u32 %v1281, 7
    %v1283 = vsub.s32 %v1280, %v1282
    %v1284 = vrot.slane %v1277, %v1283
    %v1286 = vunpack.c.l.s4 1966171168
    %v1287 = vunpack.c.0.s8 %v1286
    %v1288 = vlaneseq
    %v1289 = vshrl.u32 %v1288, 7
    %v1290 = vsub.s32 %v1287, %v1289
    %v1291 = vrot.slane %v1284, %v1290
    %s1293 = scalar_lea.vmem %s1074, 1 [#allocation3]
    %1294 = vst.msk [vmem:[%s1293] ss:$2 sm:$0x3] %vm1078, %v1291
    // Predicated region
    $region46: #{tpu_custom_call.1} parent=1 // pred_check
      %p1295 = pneg %p58
    $region47: #{tpu_custom_call.1} parent=1 // pred_check_branch
      %1297 = sbr.rel (%p1295) target = $region49
    $region48: #{tpu_custom_call.1} parent=1 // pred_region
      %v1298 = vld [vmem:[#allocation3] sm:$0xf]
      %v1299 = vld [vmem:[%s9] sm:$0xff]
      %v1300 = vld [vmem:[%s9 + $0x8] sm:$0xff]
      %v1301 = vld [vmem:[%s9 + $0x10] sm:$0xff]
      %v1302 = vld [vmem:[%s9 + $0x18] sm:$0xff]
      %v1303 = vld [vmem:[%s9 + $0x20] sm:$0xff]
      %v1304 = vld [vmem:[%s9 + $0x28] sm:$0xff]
      %v1305 = vld [vmem:[%s9 + $0x30] sm:$0xff]
      %v1306 = vld [vmem:[%s9 + $0x38] sm:$0xff]
      %v1307 = vld [vmem:[%s9 + $0x40] sm:$0xff]
      %v1308 = vld [vmem:[%s9 + $0x48] sm:$0xff]
      %v1309 = vld [vmem:[%s9 + $0x50] sm:$0xff]
      %v1310 = vld [vmem:[%s9 + $0x58] sm:$0xff]
      %v1311 = vld [vmem:[%s9 + $0x60] sm:$0xff]
      %v1312 = vld [vmem:[%s9 + $0x68] sm:$0xff]
      %v1313 = vld [vmem:[%s9 + $0x70] sm:$0xff]
      %v1314 = vld [vmem:[%s9 + $0x78] sm:$0xff]
      %v1315 = vld [vmem:[%s9 + $0x80] sm:$0xff]
      %v1316 = vld [vmem:[%s9 + $0x88] sm:$0xff]
      %v1317 = vld [vmem:[%s9 + $0x90] sm:$0xff]
      %v1318 = vld [vmem:[%s9 + $0x98] sm:$0xff]
      %v1319 = vld [vmem:[%s9 + $0xa0] sm:$0xff]
      %v1320 = vld [vmem:[%s9 + $0xa8] sm:$0xff]
      %v1321 = vld [vmem:[%s9 + $0xb0] sm:$0xff]
      %v1322 = vld [vmem:[%s9 + $0xb8] sm:$0xff]
      %v1323 = vld [vmem:[%s9 + $0xc0] sm:$0xff]
      %v1324 = vld [vmem:[%s9 + $0xc8] sm:$0xff]
      %v1325 = vld [vmem:[%s9 + $0xd0] sm:$0xff]
      %v1326 = vld [vmem:[%s9 + $0xd8] sm:$0xff]
      %v1327 = vld [vmem:[%s9 + $0xe0] sm:$0xff]
      %v1328 = vld [vmem:[%s9 + $0xe8] sm:$0xff]
      %v1329 = vld [vmem:[%s9 + $0xf0] sm:$0xff]
      %v1330 = vld [vmem:[%s9 + $0xf8] sm:$0xff]
      %v1333 = vunpack.c.l.s4 1983009808
      %v1334 = vunpack.c.0.s8 %v1333
      %v1335 = vlaneseq
      %v1336 = vshrl.u32 %v1335, 7
      %v1337 = vsub.s32 %v1334, %v1336
      %v1338 = vrot.slane %v1298, %v1337
      %v1339 = vcombine.high %v1338, %v1338
      %1342 = vmatprep.subr.mxu0 0.0
      %1343 = vmatpush1.msra.mxu0 %v1299
      %1344 = vmatprep.subr.mxu0 0.0
      %1345 = vmatpush1.msra.mxu0 %v1300
      %1346 = vmatprep.subr.mxu0 0.0
      %1347 = vmatpush1.msra.mxu0 %v1301
      %1348 = vmatprep.subr.mxu0 0.0
      %1349 = vmatpush1.msra.mxu0 %v1302
      %1350 = vmatprep.subr.mxu0 0.0
      %1351 = vmatpush1.msra.mxu0 %v1303
      %1352 = vmatprep.subr.mxu0 0.0
      %1353 = vmatpush1.msra.mxu0 %v1304
      %1354 = vmatprep.subr.mxu0 0.0
      %1355 = vmatpush1.msra.mxu0 %v1305
      %1356 = vmatprep.subr.mxu0 0.0
      %1357 = vmatpush1.msra.mxu0 %v1306
      %1358 = vmatprep.subr.mxu0 0.0
      %1359 = vmatpush1.msra.mxu0 %v1307
      %1360 = vmatprep.subr.mxu0 0.0
      %1361 = vmatpush1.msra.mxu0 %v1308
      %1362 = vmatprep.subr.mxu0 0.0
      %1363 = vmatpush1.msra.mxu0 %v1309
      %1364 = vmatprep.subr.mxu0 0.0
      %1365 = vmatpush1.msra.mxu0 %v1310
      %1366 = vmatprep.subr.mxu0 0.0
      %1367 = vmatpush1.msra.mxu0 %v1311
      %1368 = vmatprep.subr.mxu0 0.0
      %1369 = vmatpush1.msra.mxu0 %v1312
      %1370 = vmatprep.subr.mxu0 0.0
      %1371 = vmatpush1.msra.mxu0 %v1313
      %1372 = vmatprep.subr.mxu0 0.0
      %1373 = vmatpush1.msra.mxu0 %v1314
      %1374 = vmatprep.subr.mxu0 0.0
      %1375 = vmatpush1.msra.mxu0 %v1315
      %1376 = vmatprep.subr.mxu0 0.0
      %1377 = vmatpush1.msra.mxu0 %v1316
      %1378 = vmatprep.subr.mxu0 0.0
      %1379 = vmatpush1.msra.mxu0 %v1317
      %1380 = vmatprep.subr.mxu0 0.0
      %1381 = vmatpush1.msra.mxu0 %v1318
      %1382 = vmatprep.subr.mxu0 0.0
      %1383 = vmatpush1.msra.mxu0 %v1319
      %1384 = vmatprep.subr.mxu0 0.0
      %1385 = vmatpush1.msra.mxu0 %v1320
      %1386 = vmatprep.subr.mxu0 0.0
      %1387 = vmatpush1.msra.mxu0 %v1321
      %1388 = vmatprep.subr.mxu0 0.0
      %1389 = vmatpush1.msra.mxu0 %v1322
      %1390 = vmatprep.subr.mxu0 0.0
      %1391 = vmatpush1.msra.mxu0 %v1323
      %1392 = vmatprep.subr.mxu0 0.0
      %1393 = vmatpush1.msra.mxu0 %v1324
      %1394 = vmatprep.subr.mxu0 0.0
      %1395 = vmatpush1.msra.mxu0 %v1325
      %1396 = vmatprep.subr.mxu0 0.0
      %1397 = vmatpush1.msra.mxu0 %v1326
      %1398 = vmatprep.subr.mxu0 0.0
      %1399 = vmatpush1.msra.mxu0 %v1327
      %1400 = vmatprep.subr.mxu0 0.0
      %1401 = vmatpush1.msra.mxu0 %v1328
      %1402 = vmatprep.subr.mxu0 0.0
      %1403 = vmatpush1.msra.mxu0 %v1329
      %1404 = vmatprep.subr.mxu0 0.0
      %1405 = vmatpush1.msra.mxu0 %v1330
      %1406 = vmatprep.mubr.f32.mxu0 %v1339
      %1407 = vmatmul.mubr.f32.gmra.mrb[0].mxu0 %v1338
      %v1408 = vpop.f32.mrb[0].mxu0
      %v1409 = vadd.f32 0.0, %v1408
      %v1410 = vpop.f32.mrb[0].mxu0
      %1411 = vdwg.mxu0
      %vm1412 = vcmask 254976
      %1413 = vst.msk [vmem:[#allocation4] sm:$0x3] %vm1412, %v1409
    $region49: #{tpu_custom_call.1} parent=1 // pred_fallthru
      _
    // Predicated region
    $region50: #{tpu_custom_call.1} parent=1 // pred_check
      _
    $region51: #{tpu_custom_call.1} parent=1 // pred_check_branch
      %1415 = sbr.rel (0) target = $region53
    $region52: #{tpu_custom_call.1} parent=1 // pred_region
      %s1417 = ssub.s32 32, 32
      %1418 = vsyncadd [#allocation5], %s1417
      %s1420 = sshll.u32 [#allocation4], 4
      %s1421 = int_to_ptr.vmem [resolvable:$true] %s1420
      %1423 = dma.vmem_to_hbm [thread:$0]  %s1421, 32, %s10, [#allocation5]
    $region53: #{tpu_custom_call.1} parent=1 // pred_fallthru
      _
    // Predicated region
    $region54: #{tpu_custom_call.1} parent=1 // pred_check
      _
    $region55: #{tpu_custom_call.1} parent=1 // pred_check_branch
      %1425 = sbr.rel (0) target = $region57
    $region56: #{tpu_custom_call.1} parent=1 // pred_region
      %1426 = dma.done [#allocation5], 32
    $region57: #{tpu_custom_call.1} parent=1 // pred_fallthru
      _
    %1427 = vsyncpa [#allocation5], 1

</llo_original>
